<compile_context>
chip_gen: v6e
topology: v6e:2x2x1
jax: 0.10.0
libtpu: 0.0.40
codegen_flags: <defaults>
</compile_context>

<pallas_src>
import functools

import jax
import jax.numpy as jnp
import numpy as np
from jax import lax
from jax.experimental import pallas as pl
from jax.experimental.pallas import tpu as pltpu


def _round_up(x, m):
    return (x + m - 1) // m * m


def _convlstm_kernel(x_ref, h_ref, c_ref, w_ref, b_ref, mask_ref,
                     h_out_ref, c_out_ref, comb_ref, patch_ref,
                     *, kernel_size, hidden_dim, width,
                     flat_pad, cin_pad, tile_n, n_tiles):
    """Grid = (batch, spatial tile).  All tiled compute is lane-dense (TILE_N).

    x_ref    : (1, Cx, H*W)   f32   full spatial extent (resident over tiles)
    h_ref    : (1, Hd, H*W)   f32   full spatial extent (resident over tiles)
    c_ref    : (1, Hd, TILE_N) f32  spatially tiled
    w_ref    : (4*Hd, k*k*cin_pad) bf16   columns ordered (dy, dx, [h, x, 0pad])
    b_ref    : (4*Hd, 1)      f32
    mask_ref : (k, TILE_N)    f32   1/0 lane mask per horizontal tap offset
    h_out_ref, c_out_ref : (1, Hd, TILE_N) f32
    comb_ref : (cin_pad, flat_pad + H*W + flat_pad) f32  fused concat + zero pad
    patch_ref: (k*k*cin_pad, TILE_N) bf16                im2col matrix
    """
    k = kernel_size
    Hd = hidden_dim
    W = width
    pad = k // 2
    Cx = x_ref.shape[1]
    Cin = Cx + Hd
    HW = x_ref.shape[2]
    t = pl.program_id(1)

    # ---- fused [h, x] concat + "same" zero padding, built once per batch
    # ---- element (tile 0).  Scratch persists, so tiles 1..n-1 reuse it.
    @pl.when(t == 0)
    def _():
        zero_halo = jnp.zeros((cin_pad, flat_pad), comb_ref.dtype)
        comb_ref[:, 0:flat_pad] = zero_halo
        comb_ref[:, flat_pad + HW:2 * flat_pad + HW] = zero_halo
        # h first: the 8-aligned hidden block starts on sublane 0.
        comb_ref[0:Hd, flat_pad:flat_pad + HW] = h_ref[0]
        comb_ref[Hd:Cin, flat_pad:flat_pad + HW] = x_ref[0]
        if cin_pad > Cin:   # K-padding rows zeroed once; tap copies reuse them
            comb_ref[Cin:cin_pad, flat_pad:flat_pad + HW] = jnp.zeros(
                (cin_pad - Cin, HW), comb_ref.dtype)

    if n_tiles == 1:
        base = flat_pad                                    # fully static offsets
    else:
        base = flat_pad + pl.multiple_of(t * tile_n, 128)

    # ---- horizontal-wrap masks, broadcast ONCE per step (hoisted out of the
    # ---- unrolled tap loop; JAX does not CSE broadcast_in_dim).
    dx_mask = {}
    for dx in range(k):
        if dx != pad:
            dx_mask[dx] = jnp.broadcast_to(mask_ref[dx:dx + 1, :],
                                           (cin_pad, tile_n))

    # ---- im2col: every tap is a lane-shifted window of the flat comb buffer,
    # ---- stored as a full 8-aligned (cin_pad, TILE_N) block (no zero-fill).
    for dy in range(k):
        for dx in range(k):
            tap = dy * k + dx
            start = base + (dy - pad) * W + (dx - pad)
            window = comb_ref[:, pl.ds(start, tile_n)]         # (cin_pad, N)
            if dx != pad:                                      # static branch
                window = window * dx_mask[dx]
            patch_ref[tap * cin_pad:(tap + 1) * cin_pad, :] = (
                window.astype(patch_ref.dtype))

    # ---- single bf16 MXU matmul over K = k*k*cin_pad, f32 accumulation,
    # ---- bias folded into the add.
    acc = jnp.dot(w_ref[...], patch_ref[...],
                  preferred_element_type=jnp.float32) + b_ref[...]

    # ---- LSTM gate math: gates are 8-aligned sublane slices, lane-dense.
    i_g = jax.nn.sigmoid(acc[0 * Hd:1 * Hd, :])
    f_g = jax.nn.sigmoid(acc[1 * Hd:2 * Hd, :])
    o_g = jax.nn.sigmoid(acc[2 * Hd:3 * Hd, :])
    g_g = jnp.tanh(acc[3 * Hd:4 * Hd, :])

    c_next = f_g * c_ref[0] + i_g * g_g
    h_next = o_g * jnp.tanh(c_next)

    h_out_ref[0] = h_next.astype(h_out_ref.dtype)
    c_out_ref[0] = c_next.astype(c_out_ref.dtype)


def convlstm_cell_forward(x_nchw, h_nchw, c_nchw, weight_oihw, bias_vec,
                          kernel_size):
    """Pallas ConvLSTMCell forward.

    x_nchw      : (B, input_dim, H, W)
    h_nchw      : (B, hidden_dim, H, W)
    c_nchw      : (B, hidden_dim, H, W)
    weight_oihw : (4*hidden, input_dim + hidden, k, k)   (PyTorch layout)
    bias_vec    : (4*hidden,)
    returns (h_next, (h_next, c_next)) in NCHW, matching the PyTorch module.
    """
    k = kernel_size
    pad = k // 2
    B, Cx, H, W = x_nchw.shape
    Hd = h_nchw.shape[1]
    Cin = Cx + Hd
    HW = H * W
    cin_pad = _round_up(Cin, 8)                  # aligned full-block tap stores
    kdim = k * k * cin_pad
    flat_pad = _round_up(max(pad * (W + 1), 1), 128)   # lane-aligned halo

    # ---- spatial (lane) tiling: cap the im2col matrix so it stays well inside
    # ---- v7x's 64 MiB VMEM (smaller tiles are cheap there given 3.2 TB/s HBM).
    LANE_CAP = 8192                              # lanes; multiple of 128
    if HW <= LANE_CAP or HW % 128 != 0:
        tile_n = HW
    else:
        tile_n = 128
        for cand in range(LANE_CAP, 127, -128):
            if HW % cand == 0:
                tile_n = cand
                break
    n_tiles = HW // tile_n

    f32 = jnp.float32
    bf16 = jnp.bfloat16

    # Free reshapes of contiguous NCHW into the compute layout (no transpose,
    # no concat, no pad passes over HBM in the wrapper).
    x2 = x_nchw.astype(f32).reshape(B, Cx, HW)
    h2 = h_nchw.astype(f32).reshape(B, Hd, HW)
    c2 = c_nchw.astype(f32).reshape(B, Hd, HW)

    # Weight: (4Hd, [x|h], k, k) -> channel order [h, x] (matches the fused
    # concat) -> (4Hd, k, k, Cin), zero-pad Cin -> cin_pad, flatten, bf16.
    w_hx = jnp.concatenate([weight_oihw[:, Cx:Cin], weight_oihw[:, 0:Cx]],
                           axis=1).astype(f32)
    w = jnp.transpose(w_hx, (0, 2, 3, 1))
    w = jnp.pad(w, ((0, 0), (0, 0), (0, 0), (0, cin_pad - Cin)))
    w2 = w.reshape(4 * Hd, kdim).astype(bf16)
    b2 = bias_vec.astype(f32).reshape(4 * Hd, 1)

    # 0/1 validity mask over flattened spatial positions per horizontal offset.
    cols = np.arange(HW) % W
    mask_np = np.zeros((k, HW), np.float32)
    for dx in range(k):
        sx = dx - pad
        mask_np[dx] = ((cols + sx >= 0) & (cols + sx < W)).astype(np.float32)
    colmask = jnp.asarray(mask_np)

    kernel = functools.partial(
        _convlstm_kernel, kernel_size=k, hidden_dim=Hd, width=W,
        flat_pad=flat_pad, cin_pad=cin_pad, tile_n=tile_n, n_tiles=n_tiles)

    flops = 2 * B * (4 * Hd) * kdim * HW
    transcendentals = 5 * B * Hd * HW
    bytes_accessed = 4 * B * (Cx + 4 * Hd) * HW + 2 * 4 * Hd * kdim + 4 * k * HW

    vmem_est = (
        2 * (Cx + Hd) * HW * 4                 # x, h (double-buffered, resident)
        + 2 * Hd * tile_n * 4                  # c
        + 2 * 2 * Hd * tile_n * 4              # h_out, c_out
        + 4 * Hd * kdim * 2 + 4 * Hd * 4       # weight, bias
        + 2 * k * tile_n * 4                   # mask
        + cin_pad * (2 * flat_pad + HW) * 4    # comb scratch (f32)
        + kdim * tile_n * 2                    # patch scratch (bf16)
        + 12 * Hd * tile_n * 4                 # acc + gates + temporaries
    )
    vmem_limit = int(min(96 * 1024 * 1024, max(32 * 1024 * 1024, 2 * vmem_est)))

    h_next, c_next = pl.pallas_call(
        kernel,
        grid=(B, n_tiles),
        in_specs=[
            pl.BlockSpec((1, Cx, HW), lambda b, t: (b, 0, 0)),       # x
            pl.BlockSpec((1, Hd, HW), lambda b, t: (b, 0, 0)),       # h
            pl.BlockSpec((1, Hd, tile_n), lambda b, t: (b, 0, t)),   # c
            pl.BlockSpec((4 * Hd, kdim), lambda b, t: (0, 0)),       # weight
            pl.BlockSpec((4 * Hd, 1), lambda b, t: (0, 0)),          # bias
            pl.BlockSpec((k, tile_n), lambda b, t: (0, t)),          # mask
        ],
        out_specs=(
            pl.BlockSpec((1, Hd, tile_n), lambda b, t: (b, 0, t)),
            pl.BlockSpec((1, Hd, tile_n), lambda b, t: (b, 0, t)),
        ),
        out_shape=(
            jax.ShapeDtypeStruct((B, Hd, HW), f32),
            jax.ShapeDtypeStruct((B, Hd, HW), f32),
        ),
        scratch_shapes=[
            pltpu.VMEM((cin_pad, 2 * flat_pad + HW), f32),   # fused concat+pad
            pltpu.VMEM((kdim, tile_n), bf16),                # im2col patch
        ],
        compiler_params=pltpu.CompilerParams(
            dimension_semantics=("parallel", "arbitrary"),
            vmem_limit_bytes=vmem_limit,
        ),
        cost_estimate=pl.CostEstimate(
            flops=flops,
            transcendentals=transcendentals,
            bytes_accessed=bytes_accessed,
        ),
    )(x2, h2, c2, w2, b2, colmask)

    h_next = h_next.reshape(B, Hd, H, W)
    c_next = c_next.reshape(B, Hd, H, W)
    return h_next, (h_next, c_next)


def _reference_forward(x, h, c, w_oihw, b, k):
    """Mixed-precision pure-JAX reference mirroring PyTorch ConvLSTMCell.forward
    (bf16 conv operands, f32 accumulation / gate math), NCHW."""
    pad = k // 2
    combined = jnp.concatenate([x, h], axis=1).astype(jnp.bfloat16)
    conv = lax.conv_general_dilated(
        combined, w_oihw.astype(jnp.bfloat16),
        window_strides=(1, 1), padding=((pad, pad), (pad, pad)),
        dimension_numbers=("NCHW", "OIHW", "NCHW"),
        preferred_element_type=jnp.float32)
    conv = conv + b.astype(jnp.float32).reshape(1, -1, 1, 1)
    cc_i, cc_f, cc_o, cc_g = jnp.split(conv, 4, axis=1)
    i = jax.nn.sigmoid(cc_i)
    f = jax.nn.sigmoid(cc_f)
    o = jax.nn.sigmoid(cc_o)
    g = jnp.tanh(cc_g)
    c_next = f * c.astype(jnp.float32) + i * g
    h_next = o * jnp.tanh(c_next)
    return h_next, c_next


if __name__ == "__main__":
    batch = 2
    input_dim = 4
    hidden_dim = 32
    height = width = 16
    kernel_size = 3
    use_bias = True

    key = jax.random.PRNGKey(0)
    kx, kh, kc, kw, kb = jax.random.split(key, 5)

    x = jax.random.normal(kx, (batch, input_dim, height, width), jnp.float32)
    h_cur = jax.random.normal(kh, (batch, hidden_dim, height, width), jnp.float32)
    c_cur = jax.random.normal(kc, (batch, hidden_dim, height, width), jnp.float32)

    cin = input_dim + hidden_dim
    weight = 0.1 * jax.random.normal(
        kw, (4 * hidden_dim, cin, kernel_size, kernel_size), jnp.float32)
    bias = (0.1 * jax.random.normal(kb, (4 * hidden_dim,), jnp.float32)
            if use_bias else jnp.zeros((4 * hidden_dim,), jnp.float32))

    fwd = jax.jit(functools.partial(convlstm_cell_forward,
                                    kernel_size=kernel_size))
    h_next, (h_next2, c_next) = fwd(x, h_cur, c_cur, weight, bias)
    jax.block_until_ready((h_next, c_next))

    # Correctness check against a mixed-precision (bf16 matmul operands, f32
    # accumulation) pure-JAX reference — the kernel uses bf16 MXU operands.
    h_ref, c_ref = _reference_forward(x, h_cur, c_cur, weight, bias, kernel_size)
    np.testing.assert_allclose(np.asarray(h_next), np.asarray(h_ref),
                               rtol=2e-3, atol=2e-3)
    np.testing.assert_allclose(np.asarray(c_next), np.asarray(c_ref),
                               rtol=2e-3, atol=2e-3)

    print("KERNEL_OK")
</pallas_src>

<mosaic_0001>
module attributes {stable_mosaic.version = 11 : i64} {
  func.func @_convlstm_kernel(%arg0: i32, %arg1: i32, %arg2: memref<1x4x256xf32, #tpu.memory_space<vmem>>, %arg3: memref<1x32x256xf32, #tpu.memory_space<vmem>>, %arg4: memref<1x32x256xf32, #tpu.memory_space<vmem>>, %arg5: memref<128x360xbf16, #tpu.memory_space<vmem>>, %arg6: memref<128x1xf32, #tpu.memory_space<vmem>>, %arg7: memref<3x256xf32, #tpu.memory_space<vmem>>, %arg8: memref<1x32x256xf32, #tpu.memory_space<vmem>>, %arg9: memref<1x32x256xf32, #tpu.memory_space<vmem>>, %arg10: memref<40x512xf32, #tpu.memory_space<vmem>>, %arg11: memref<360x256xbf16, #tpu.memory_space<vmem>>) attributes {dimension_semantics = [#tpu.dimension_semantics<parallel>, #tpu.dimension_semantics<arbitrary>], iteration_bounds = array<i64: 2, 1>, scalar_prefetch = 0 : i64, scratch_operands = 2 : i64, tpu.core_type = #tpu.core_type<tc>, window_params = [{transform_indices = @transform_0, window_bounds = array<i64: 1, 4, 256>}, {transform_indices = @transform_1, window_bounds = array<i64: 1, 32, 256>}, {transform_indices = @transform_2, window_bounds = array<i64: 1, 32, 256>}, {pipeline_mode = #tpu.pipeline_mode<synchronous>, transform_indices = @transform_3, window_bounds = array<i64: 128, 360>}, {pipeline_mode = #tpu.pipeline_mode<synchronous>, transform_indices = @transform_4, window_bounds = array<i64: 128, 1>}, {transform_indices = @transform_5, window_bounds = array<i64: 3, 256>}, {transform_indices = @transform_6, window_bounds = array<i64: 1, 32, 256>}, {transform_indices = @transform_7, window_bounds = array<i64: 1, 32, 256>}]} {
    %c0_i32 = arith.constant 0 : i32
    %0 = arith.cmpi eq, %arg1, %c0_i32 : i32
    %1 = arith.extui %0 : i1 to i32
    %c0_i32_0 = arith.constant 0 : i32
    %2 = arith.cmpi ne, %1, %c0_i32_0 : i32
    scf.if %2 {
      %cst_40 = arith.constant 0.000000e+00 : f32
      %81 = vector.broadcast %cst_40 : f32 to vector<40x128xf32>
      %c0_41 = arith.constant 0 : index
      %c0_42 = arith.constant 0 : index
      %82 = vector.load %arg10[%c0_41, %c0_42] : memref<40x512xf32, #tpu.memory_space<vmem>>, vector<40x128xf32>
      tpu.vector_store %arg10[%c0_41, %c0_42], %81 {strides = array<i32>} : memref<40x512xf32, #tpu.memory_space<vmem>>, vector<40x128xf32>,
      %c0_43 = arith.constant 0 : index
      %c384 = arith.constant 384 : index
      %83 = vector.load %arg10[%c0_43, %c384] : memref<40x512xf32, #tpu.memory_space<vmem>>, vector<40x128xf32>
      tpu.vector_store %arg10[%c0_43, %c384], %81 {strides = array<i32>} : memref<40x512xf32, #tpu.memory_space<vmem>>, vector<40x128xf32>,
      %c0_44 = arith.constant 0 : index
      %c0_45 = arith.constant 0 : index
      %c0_46 = arith.constant 0 : index
      %84 = vector.load %arg3[%c0_44, %c0_45, %c0_46] : memref<1x32x256xf32, #tpu.memory_space<vmem>>, vector<1x32x256xf32>
      %85 = vector.shape_cast %84 : vector<1x32x256xf32> to vector<32x256xf32>
      %c0_47 = arith.constant 0 : index
      %c128_48 = arith.constant 128 : index
      %86 = vector.load %arg10[%c0_47, %c128_48] : memref<40x512xf32, #tpu.memory_space<vmem>>, vector<32x256xf32>
      tpu.vector_store %arg10[%c0_47, %c128_48], %85 {strides = array<i32>} : memref<40x512xf32, #tpu.memory_space<vmem>>, vector<32x256xf32>,
      %c0_49 = arith.constant 0 : index
      %c0_50 = arith.constant 0 : index
      %c0_51 = arith.constant 0 : index
      %87 = vector.load %arg2[%c0_49, %c0_50, %c0_51] : memref<1x4x256xf32, #tpu.memory_space<vmem>>, vector<1x4x256xf32>
      %88 = vector.shape_cast %87 : vector<1x4x256xf32> to vector<4x256xf32>
      %c32 = arith.constant 32 : index
      %c128_52 = arith.constant 128 : index
      %89 = vector.load %arg10[%c32, %c128_52] : memref<40x512xf32, #tpu.memory_space<vmem>>, vector<4x256xf32>
      tpu.vector_store %arg10[%c32, %c128_52], %88 {strides = array<i32>} : memref<40x512xf32, #tpu.memory_space<vmem>>, vector<4x256xf32>,
      %cst_53 = arith.constant 0.000000e+00 : f32
      %90 = vector.broadcast %cst_53 : f32 to vector<4x256xf32>
      %c36 = arith.constant 36 : index
      %c128_54 = arith.constant 128 : index
      %91 = vector.load %arg10[%c36, %c128_54] : memref<40x512xf32, #tpu.memory_space<vmem>>, vector<4x256xf32>
      tpu.vector_store %arg10[%c36, %c128_54], %90 {strides = array<i32>} : memref<40x512xf32, #tpu.memory_space<vmem>>, vector<4x256xf32>,
    } else {
    }
    %c0 = arith.constant 0 : index
    %c0_1 = arith.constant 0 : index
    %3 = vector.load %arg7[%c0, %c0_1] : memref<3x256xf32, #tpu.memory_space<vmem>>, vector<1x256xf32>
    %4 = vector.shape_cast %3 : vector<1x256xf32> to vector<1x256xf32>
    %5 = vector.broadcast %4 : vector<1x256xf32> to vector<40x256xf32>
    %c2 = arith.constant 2 : index
    %c0_2 = arith.constant 0 : index
    %6 = vector.load %arg7[%c2, %c0_2] : memref<3x256xf32, #tpu.memory_space<vmem>>, vector<1x256xf32>
    %7 = vector.shape_cast %6 : vector<1x256xf32> to vector<1x256xf32>
    %8 = vector.broadcast %7 : vector<1x256xf32> to vector<40x256xf32>
    %c0_3 = arith.constant 0 : index
    %c111 = arith.constant 111 : index
    %9 = vector.load %arg10[%c0_3, %c111] : memref<40x512xf32, #tpu.memory_space<vmem>>, vector<40x256xf32>
    %10 = arith.mulf %9, %5 : vector<40x256xf32>
    %11 = arith.truncf %10 : vector<40x256xf32> to vector<40x256xbf16>
    %c0_4 = arith.constant 0 : index
    %c0_5 = arith.constant 0 : index
    %12 = vector.load %arg11[%c0_4, %c0_5] : memref<360x256xbf16, #tpu.memory_space<vmem>>, vector<40x256xbf16>
    tpu.vector_store %arg11[%c0_4, %c0_5], %11 {strides = array<i32>} : memref<360x256xbf16, #tpu.memory_space<vmem>>, vector<40x256xbf16>,
    %c0_6 = arith.constant 0 : index
    %c112 = arith.constant 112 : index
    %13 = vector.load %arg10[%c0_6, %c112] : memref<40x512xf32, #tpu.memory_space<vmem>>, vector<40x256xf32>
    %14 = arith.truncf %13 : vector<40x256xf32> to vector<40x256xbf16>
    %c40 = arith.constant 40 : index
    %c0_7 = arith.constant 0 : index
    %15 = vector.load %arg11[%c40, %c0_7] : memref<360x256xbf16, #tpu.memory_space<vmem>>, vector<40x256xbf16>
    tpu.vector_store %arg11[%c40, %c0_7], %14 {strides = array<i32>} : memref<360x256xbf16, #tpu.memory_space<vmem>>, vector<40x256xbf16>,
    %c0_8 = arith.constant 0 : index
    %c113 = arith.constant 113 : index
    %16 = vector.load %arg10[%c0_8, %c113] : memref<40x512xf32, #tpu.memory_space<vmem>>, vector<40x256xf32>
    %17 = arith.mulf %16, %8 : vector<40x256xf32>
    %18 = arith.truncf %17 : vector<40x256xf32> to vector<40x256xbf16>
    %c80 = arith.constant 80 : index
    %c0_9 = arith.constant 0 : index
    %19 = vector.load %arg11[%c80, %c0_9] : memref<360x256xbf16, #tpu.memory_space<vmem>>, vector<40x256xbf16>
    tpu.vector_store %arg11[%c80, %c0_9], %18 {strides = array<i32>} : memref<360x256xbf16, #tpu.memory_space<vmem>>, vector<40x256xbf16>,
    %c0_10 = arith.constant 0 : index
    %c127 = arith.constant 127 : index
    %20 = vector.load %arg10[%c0_10, %c127] : memref<40x512xf32, #tpu.memory_space<vmem>>, vector<40x256xf32>
    %21 = arith.mulf %20, %5 : vector<40x256xf32>
    %22 = arith.truncf %21 : vector<40x256xf32> to vector<40x256xbf16>
    %c120 = arith.constant 120 : index
    %c0_11 = arith.constant 0 : index
    %23 = vector.load %arg11[%c120, %c0_11] : memref<360x256xbf16, #tpu.memory_space<vmem>>, vector<40x256xbf16>
    tpu.vector_store %arg11[%c120, %c0_11], %22 {strides = array<i32>} : memref<360x256xbf16, #tpu.memory_space<vmem>>, vector<40x256xbf16>,
    %c0_12 = arith.constant 0 : index
    %c128 = arith.constant 128 : index
    %24 = vector.load %arg10[%c0_12, %c128] : memref<40x512xf32, #tpu.memory_space<vmem>>, vector<40x256xf32>
    %25 = arith.truncf %24 : vector<40x256xf32> to vector<40x256xbf16>
    %c160 = arith.constant 160 : index
    %c0_13 = arith.constant 0 : index
    %26 = vector.load %arg11[%c160, %c0_13] : memref<360x256xbf16, #tpu.memory_space<vmem>>, vector<40x256xbf16>
    tpu.vector_store %arg11[%c160, %c0_13], %25 {strides = array<i32>} : memref<360x256xbf16, #tpu.memory_space<vmem>>, vector<40x256xbf16>,
    %c0_14 = arith.constant 0 : index
    %c129 = arith.constant 129 : index
    %27 = vector.load %arg10[%c0_14, %c129] : memref<40x512xf32, #tpu.memory_space<vmem>>, vector<40x256xf32>
    %28 = arith.mulf %27, %8 : vector<40x256xf32>
    %29 = arith.truncf %28 : vector<40x256xf32> to vector<40x256xbf16>
    %c200 = arith.constant 200 : index
    %c0_15 = arith.constant 0 : index
    %30 = vector.load %arg11[%c200, %c0_15] : memref<360x256xbf16, #tpu.memory_space<vmem>>, vector<40x256xbf16>
    tpu.vector_store %arg11[%c200, %c0_15], %29 {strides = array<i32>} : memref<360x256xbf16, #tpu.memory_space<vmem>>, vector<40x256xbf16>,
    %c0_16 = arith.constant 0 : index
    %c143 = arith.constant 143 : index
    %31 = vector.load %arg10[%c0_16, %c143] : memref<40x512xf32, #tpu.memory_space<vmem>>, vector<40x256xf32>
    %32 = arith.mulf %31, %5 : vector<40x256xf32>
    %33 = arith.truncf %32 : vector<40x256xf32> to vector<40x256xbf16>
    %c240 = arith.constant 240 : index
    %c0_17 = arith.constant 0 : index
    %34 = vector.load %arg11[%c240, %c0_17] : memref<360x256xbf16, #tpu.memory_space<vmem>>, vector<40x256xbf16>
    tpu.vector_store %arg11[%c240, %c0_17], %33 {strides = array<i32>} : memref<360x256xbf16, #tpu.memory_space<vmem>>, vector<40x256xbf16>,
    %c0_18 = arith.constant 0 : index
    %c144 = arith.constant 144 : index
    %35 = vector.load %arg10[%c0_18, %c144] : memref<40x512xf32, #tpu.memory_space<vmem>>, vector<40x256xf32>
    %36 = arith.truncf %35 : vector<40x256xf32> to vector<40x256xbf16>
    %c280 = arith.constant 280 : index
    %c0_19 = arith.constant 0 : index
    %37 = vector.load %arg11[%c280, %c0_19] : memref<360x256xbf16, #tpu.memory_space<vmem>>, vector<40x256xbf16>
    tpu.vector_store %arg11[%c280, %c0_19], %36 {strides = array<i32>} : memref<360x256xbf16, #tpu.memory_space<vmem>>, vector<40x256xbf16>,
    %c0_20 = arith.constant 0 : index
    %c145 = arith.constant 145 : index
    %38 = vector.load %arg10[%c0_20, %c145] : memref<40x512xf32, #tpu.memory_space<vmem>>, vector<40x256xf32>
    %39 = arith.mulf %38, %8 : vector<40x256xf32>
    %40 = arith.truncf %39 : vector<40x256xf32> to vector<40x256xbf16>
    %c320 = arith.constant 320 : index
    %c0_21 = arith.constant 0 : index
    %41 = vector.load %arg11[%c320, %c0_21] : memref<360x256xbf16, #tpu.memory_space<vmem>>, vector<40x256xbf16>
    tpu.vector_store %arg11[%c320, %c0_21], %40 {strides = array<i32>} : memref<360x256xbf16, #tpu.memory_space<vmem>>, vector<40x256xbf16>,
    %c0_22 = arith.constant 0 : index
    %c0_23 = arith.constant 0 : index
    %42 = vector.load %arg5[%c0_22, %c0_23] : memref<128x360xbf16, #tpu.memory_space<vmem>>, vector<128x360xbf16>
    %c0_24 = arith.constant 0 : index
    %c0_25 = arith.constant 0 : index
    %43 = vector.load %arg11[%c0_24, %c0_25] : memref<360x256xbf16, #tpu.memory_space<vmem>>, vector<360x256xbf16>
    %cst = arith.constant dense<0.000000e+00> : vector<128x256xf32>
    %44 = tpu.matmul %42, %43, %cst {dimension_numbers = #tpu.dot_dimension_numbers<[1], [0], [0], [1], [0, 0, 1, 1], [], []>} : vector<128x360xbf16>, vector<360x256xbf16>, vector<128x256xf32> -> vector<128x256xf32>
    %c0_26 = arith.constant 0 : index
    %c0_27 = arith.constant 0 : index
    %45 = vector.load %arg6[%c0_26, %c0_27] : memref<128x1xf32, #tpu.memory_space<vmem>>, vector<128x1xf32>
    %46 = vector.broadcast %45 : vector<128x1xf32> to vector<128x256xf32>
    %47 = arith.addf %44, %46 : vector<128x256xf32>
    %48 = vector.extract_strided_slice %47 {offsets = [0, 0], sizes = [32, 256], strides = [1, 1]} : vector<128x256xf32> to vector<32x256xf32>
    %49 = arith.negf %48 : vector<32x256xf32>
    %50 = math.exp %49 : vector<32x256xf32>
    %cst_28 = arith.constant 1.000000e+00 : f32
    %51 = vector.broadcast %cst_28 : f32 to vector<32x256xf32>
    %52 = arith.addf %51, %50 : vector<32x256xf32>
    %53 = arith.divf %51, %52 : vector<32x256xf32>
    %54 = vector.extract_strided_slice %47 {offsets = [32, 0], sizes = [32, 256], strides = [1, 1]} : vector<128x256xf32> to vector<32x256xf32>
    %55 = arith.negf %54 : vector<32x256xf32>
    %56 = math.exp %55 : vector<32x256xf32>
    %cst_29 = arith.constant 1.000000e+00 : f32
    %57 = vector.broadcast %cst_29 : f32 to vector<32x256xf32>
    %58 = arith.addf %57, %56 : vector<32x256xf32>
    %59 = arith.divf %57, %58 : vector<32x256xf32>
    %60 = vector.extract_strided_slice %47 {offsets = [64, 0], sizes = [32, 256], strides = [1, 1]} : vector<128x256xf32> to vector<32x256xf32>
    %61 = arith.negf %60 : vector<32x256xf32>
    %62 = math.exp %61 : vector<32x256xf32>
    %cst_30 = arith.constant 1.000000e+00 : f32
    %63 = vector.broadcast %cst_30 : f32 to vector<32x256xf32>
    %64 = arith.addf %63, %62 : vector<32x256xf32>
    %65 = arith.divf %63, %64 : vector<32x256xf32>
    %66 = vector.extract_strided_slice %47 {offsets = [96, 0], sizes = [32, 256], strides = [1, 1]} : vector<128x256xf32> to vector<32x256xf32>
    %67 = math.tanh %66 : vector<32x256xf32>
    %c0_31 = arith.constant 0 : index
    %c0_32 = arith.constant 0 : index
    %c0_33 = arith.constant 0 : index
    %68 = vector.load %arg4[%c0_31, %c0_32, %c0_33] : memref<1x32x256xf32, #tpu.memory_space<vmem>>, vector<1x32x256xf32>
    %69 = vector.shape_cast %68 : vector<1x32x256xf32> to vector<32x256xf32>
    %70 = arith.mulf %59, %69 : vector<32x256xf32>
    %71 = arith.mulf %53, %67 : vector<32x256xf32>
    %72 = arith.addf %70, %71 : vector<32x256xf32>
    %73 = math.tanh %72 : vector<32x256xf32>
    %74 = arith.mulf %65, %73 : vector<32x256xf32>
    %c0_34 = arith.constant 0 : index
    %c0_35 = arith.constant 0 : index
    %c0_36 = arith.constant 0 : index
    %75 = vector.load %arg8[%c0_34, %c0_35, %c0_36] : memref<1x32x256xf32, #tpu.memory_space<vmem>>, vector<1x32x256xf32>
    %76 = vector.shape_cast %75 : vector<1x32x256xf32> to vector<32x256xf32>
    %77 = vector.shape_cast %74 : vector<32x256xf32> to vector<1x32x256xf32>
    tpu.vector_store %arg8[%c0_34, %c0_35, %c0_36], %77 {strides = array<i32>} : memref<1x32x256xf32, #tpu.memory_space<vmem>>, vector<1x32x256xf32>,
    %c0_37 = arith.constant 0 : index
    %c0_38 = arith.constant 0 : index
    %c0_39 = arith.constant 0 : index
    %78 = vector.load %arg9[%c0_37, %c0_38, %c0_39] : memref<1x32x256xf32, #tpu.memory_space<vmem>>, vector<1x32x256xf32>
    %79 = vector.shape_cast %78 : vector<1x32x256xf32> to vector<32x256xf32>
    %80 = vector.shape_cast %72 : vector<32x256xf32> to vector<1x32x256xf32>
    tpu.vector_store %arg9[%c0_37, %c0_38, %c0_39], %80 {strides = array<i32>} : memref<1x32x256xf32, #tpu.memory_space<vmem>>, vector<1x32x256xf32>,
    return
  }
  func.func @transform_0(%arg0: i32, %arg1: i32) -> (i32, i32, i32) {
    %c0_i32 = arith.constant 0 : i32
    %c0_i32_0 = arith.constant 0 : i32
    %c0_i32_1 = arith.constant 0 : i32
    return %arg0, %c0_i32, %c0_i32_0 : i32, i32, i32
  }
  func.func @transform_1(%arg0: i32, %arg1: i32) -> (i32, i32, i32) {
    %c0_i32 = arith.constant 0 : i32
    %c0_i32_0 = arith.constant 0 : i32
    %c0_i32_1 = arith.constant 0 : i32
    return %arg0, %c0_i32, %c0_i32_0 : i32, i32, i32
  }
  func.func @transform_2(%arg0: i32, %arg1: i32) -> (i32, i32, i32) {
    %c0_i32 = arith.constant 0 : i32
    %c0_i32_0 = arith.constant 0 : i32
    return %arg0, %c0_i32, %arg1 : i32, i32, i32
  }
  func.func @transform_3(%arg0: i32, %arg1: i32) -> (i32, i32) {
    %c0_i32 = arith.constant 0 : i32
    %c0_i32_0 = arith.constant 0 : i32
    %c0_i32_1 = arith.constant 0 : i32
    return %c0_i32, %c0_i32_0 : i32, i32
  }
  func.func @transform_4(%arg0: i32, %arg1: i32) -> (i32, i32) {
    %c0_i32 = arith.constant 0 : i32
    %c0_i32_0 = arith.constant 0 : i32
    %c0_i32_1 = arith.constant 0 : i32
    return %c0_i32, %c0_i32_0 : i32, i32
  }
  func.func @transform_5(%arg0: i32, %arg1: i32) -> (i32, i32) {
    %c0_i32 = arith.constant 0 : i32
    %c0_i32_0 = arith.constant 0 : i32
    return %c0_i32, %arg1 : i32, i32
  }
  func.func @transform_6(%arg0: i32, %arg1: i32) -> (i32, i32, i32) {
    %c0_i32 = arith.constant 0 : i32
    %c0_i32_0 = arith.constant 0 : i32
    return %arg0, %c0_i32, %arg1 : i32, i32, i32
  }
  func.func @transform_7(%arg0: i32, %arg1: i32) -> (i32, i32, i32) {
    %c0_i32 = arith.constant 0 : i32
    %c0_i32_0 = arith.constant 0 : i32
    return %arg0, %c0_i32, %arg1 : i32, i32, i32
  }
}

</mosaic_0001>

<llo_original>
// kernel: convlstm_cell_forward.1
$region0: #{convlstm_cell_forward.1}
  #allocation0 [shape = 'u32[]', space=smem, size = 0x4, offset = 0x4, fixed_abs, tag = 'smem constant byte address 0x4 - core index']
  #allocation1 [shape = 'u32[144,128]{1,0:T(1,128)}', space=vmem, size = 0x12000, scoped, tag = 'internal scratch']
  #allocation2 [shape = 'f32[40,512]{1,0:T(8,128)}', space=vmem, size = 0x14000, scoped, tag = 'scratch operand']
  #allocation3 [shape = 'bf16[360,256]{1,0:T(8,128)(2,1)}', space=vmem, size = 0x2d000, scoped, tag = 'scratch operand']
  %s0 = inlined_call_operand.vmem [shape: f32[2,4,256], index: 0, kind: input, shape index: {}]
  %s1 = inlined_call_operand.vmem [shape: f32[2,32,256], index: 1, kind: input, shape index: {}]
  %s2 = inlined_call_operand.vmem [shape: f32[2,32,256], index: 2, kind: input, shape index: {}]
  %s3 = inlined_call_operand.vmem [shape: bf16[128,360], index: 3, kind: input, shape index: {}]
  %s4 = inlined_call_operand.vmem [shape: f32[128,1], index: 4, kind: input, shape index: {}]
  %s5 = inlined_call_operand.vmem [shape: f32[3,256], index: 5, kind: input, shape index: {}]
  %s6 = inlined_call_operand.vmem [shape: f32[2,32,256], index: 6, kind: output, shape index: {0}]
  %s7 = inlined_call_operand.vmem [shape: f32[2,32,256], index: 7, kind: output, shape index: {1}]
  %8 = xla_tuple %s6, %s7
  %s9 = sld [smem:[#allocation0]]
  $region69: #{convlstm_cell_forward.1} parent=0
    _
  %s11 = ssub.s32 1, %s9
  %s12 = scalar_select 0, %s11, %s9
  loop: start=0, step=1, limit=4
  $region2: #{convlstm_cell_forward.1} parent=0 // loop_pre_header
    _
  $region3: #{convlstm_cell_forward.1} parent=0 // loop_header
    %s14 = sphi 0, %s18
    %p15 = scmp.ge.s32.totalorder %s14, 4
    %s21 = sphi 0, %s33
    %s22 = sphi 0, %s29
    %s23 = sphi 0, %s21
    %s24 = sphi 0, %s22
    %s25 = sphi 0, %s23
    %s26 = sphi 0, %s24
    %s36 = sphi 0, %s38
    %s39 = sphi 0, %s36
    %s40 = sphi 0, %s39
    %s56 = sphi 0, %s40
    %s62 = sphi 0, %s64
    %s65 = sphi 0, %s62
    %s66 = sphi 0, %s65
    %s82 = sphi 0, %s66
    %s90 = sphi 0, %s92
    %s93 = sphi 0, %s90
    %s94 = sphi 0, %s93
    %s110 = sphi 0, %s94
    %s114 = sphi 0, %s114
    %s116 = sphi 0, %s114
    %s117 = sphi 0, %s116
    %s131 = sphi 0, %s117
    %s135 = sphi 0, %s135
    %s137 = sphi 0, %s135
    %s138 = sphi 0, %s137
    %s152 = sphi 0, %s138
    %s158 = sphi 0, %s160
    %s161 = sphi 0, %s158
    %s162 = sphi 0, %s161
    %s178 = sphi 0, %s162
    %s186 = sphi 0, %s188
    %s189 = sphi 0, %s186
    %s190 = sphi 0, %s189
    %s206 = sphi 0, %s190
    %s214 = sphi 0, %s216
    %s217 = sphi 0, %s214
    %s218 = sphi 0, %s217
    %s234 = sphi 0, %s218
  $region4: #{convlstm_cell_forward.1} parent=0 // loop_header_branch
    %17 = sbr.rel (%p15) target = $region8
  $region5: #{convlstm_cell_forward.1} parent=0 // loop_body
    %s19 = ssub.s32 %s14, 1
    %s20 = ssub.s32 %s14, 2
    %s27 = sadd.s32 1, %s22
    %p28 = scmp.ge.s32.totalorder %s27, 1
    %s29 = scalar_select %p28, 0, %s27
    %s30 = sadd.s32 1, %s21
    %s31 = scalar_select %p28, %s30, %s21
    %p32 = scmp.ge.s32.totalorder %s31, 2
    %s33 = scalar_select %p32, 0, %s31
    %s34 = ssub.s32 %s21, %s33
    %p35 = scmp.eq.s32.totalorder %s34, 0
    %s37 = sadd.s32 %s36, 1
    %s38 = scalar_select %p35, %s36, %s37
    %p41 = pneg %p35
    %p42 = scmp.eq.s32.totalorder %s14, 1
    %p43 = por %p41, %p42
    %p44 = scmp.ne.s32.totalorder %s36, %s39
    %p45 = scmp.eq.s32.totalorder %s14, 0
    %p46 = por %p44, %p45
    %p47 = scmp.ne.s32.totalorder %s36, %s39
    %p48 = scmp.eq.s32.totalorder %s19, 1
    %p49 = por %p47, %p48
    %p50 = scmp.ne.s32.totalorder %s39, %s40
    %p51 = scmp.eq.s32.totalorder %s19, 0
    %p52 = por %p50, %p51
    %p53 = scmp.ne.s32.totalorder %s39, %s40
    %p54 = scmp.eq.s32.totalorder %s20, 1
    %p55 = por %p53, %p54
    %p57 = scmp.ne.s32.totalorder %s40, %s56
    %p58 = scmp.eq.s32.totalorder %s20, 0
    %p59 = por %p57, %p58
    %s60 = ssub.s32 %s21, %s33
    %p61 = scmp.eq.s32.totalorder %s60, 0
    %s63 = sadd.s32 %s62, 1
    %s64 = scalar_select %p61, %s62, %s63
    %p67 = pneg %p61
    %p68 = scmp.eq.s32.totalorder %s14, 1
    %p69 = por %p67, %p68
    %p70 = scmp.ne.s32.totalorder %s62, %s65
    %p71 = scmp.eq.s32.totalorder %s14, 0
    %p72 = por %p70, %p71
    %p73 = scmp.ne.s32.totalorder %s62, %s65
    %p74 = scmp.eq.s32.totalorder %s19, 1
    %p75 = por %p73, %p74
    %p76 = scmp.ne.s32.totalorder %s65, %s66
    %p77 = scmp.eq.s32.totalorder %s19, 0
    %p78 = por %p76, %p77
    %p79 = scmp.ne.s32.totalorder %s65, %s66
    %p80 = scmp.eq.s32.totalorder %s20, 1
    %p81 = por %p79, %p80
    %p83 = scmp.ne.s32.totalorder %s66, %s82
    %p84 = scmp.eq.s32.totalorder %s20, 0
    %p85 = por %p83, %p84
    %s86 = ssub.s32 %s21, %s33
    %s87 = ssub.s32 %s22, %s29
    %s88 = sor.u32 %s86, %s87
    %p89 = scmp.eq.s32.totalorder %s88, 0
    %s91 = sadd.s32 %s90, 1
    %s92 = scalar_select %p89, %s90, %s91
    %p95 = pneg %p89
    %p96 = scmp.eq.s32.totalorder %s14, 1
    %p97 = por %p95, %p96
    %p98 = scmp.ne.s32.totalorder %s90, %s93
    %p99 = scmp.eq.s32.totalorder %s14, 0
    %p100 = por %p98, %p99
    %p101 = scmp.ne.s32.totalorder %s90, %s93
    %p102 = scmp.eq.s32.totalorder %s19, 1
    %p103 = por %p101, %p102
    %p104 = scmp.ne.s32.totalorder %s93, %s94
    %p105 = scmp.eq.s32.totalorder %s19, 0
    %p106 = por %p104, %p105
    %p107 = scmp.ne.s32.totalorder %s93, %s94
    %p108 = scmp.eq.s32.totalorder %s20, 1
    %p109 = por %p107, %p108
    %p111 = scmp.ne.s32.totalorder %s94, %s110
    %p112 = scmp.eq.s32.totalorder %s20, 0
    %p113 = por %p111, %p112
    %s115 = sadd.s32 %s114, 1
    %p118 = scmp.eq.s32.totalorder %s14, 1
    %p119 = scmp.ne.s32.totalorder %s114, %s116
    %p120 = scmp.eq.s32.totalorder %s14, 0
    %p121 = por %p119, %p120
    %p122 = scmp.ne.s32.totalorder %s114, %s116
    %p123 = scmp.eq.s32.totalorder %s19, 1
    %p124 = por %p122, %p123
    %p125 = scmp.ne.s32.totalorder %s116, %s117
    %p126 = scmp.eq.s32.totalorder %s19, 0
    %p127 = por %p125, %p126
    %p128 = scmp.ne.s32.totalorder %s116, %s117
    %p129 = scmp.eq.s32.totalorder %s20, 1
    %p130 = por %p128, %p129
    %p132 = scmp.ne.s32.totalorder %s117, %s131
    %p133 = scmp.eq.s32.totalorder %s20, 0
    %p134 = por %p132, %p133
    %s136 = sadd.s32 %s135, 1
    %p139 = scmp.eq.s32.totalorder %s14, 1
    %p140 = scmp.ne.s32.totalorder %s135, %s137
    %p141 = scmp.eq.s32.totalorder %s14, 0
    %p142 = por %p140, %p141
    %p143 = scmp.ne.s32.totalorder %s135, %s137
    %p144 = scmp.eq.s32.totalorder %s19, 1
    %p145 = por %p143, %p144
    %p146 = scmp.ne.s32.totalorder %s137, %s138
    %p147 = scmp.eq.s32.totalorder %s19, 0
    %p148 = por %p146, %p147
    %p149 = scmp.ne.s32.totalorder %s137, %s138
    %p150 = scmp.eq.s32.totalorder %s20, 1
    %p151 = por %p149, %p150
    %p153 = scmp.ne.s32.totalorder %s138, %s152
    %p154 = scmp.eq.s32.totalorder %s20, 0
    %p155 = por %p153, %p154
    %s156 = ssub.s32 %s22, %s29
    %p157 = scmp.eq.s32.totalorder %s156, 0
    %s159 = sadd.s32 %s158, 1
    %s160 = scalar_select %p157, %s158, %s159
    %p163 = pneg %p157
    %p164 = scmp.eq.s32.totalorder %s14, 1
    %p165 = por %p163, %p164
    %p166 = scmp.ne.s32.totalorder %s158, %s161
    %p167 = scmp.eq.s32.totalorder %s14, 0
    %p168 = por %p166, %p167
    %p169 = scmp.ne.s32.totalorder %s158, %s161
    %p170 = scmp.eq.s32.totalorder %s19, 1
    %p171 = por %p169, %p170
    %p172 = scmp.ne.s32.totalorder %s161, %s162
    %p173 = scmp.eq.s32.totalorder %s19, 0
    %p174 = por %p172, %p173
    %p175 = scmp.ne.s32.totalorder %s161, %s162
    %p176 = scmp.eq.s32.totalorder %s20, 1
    %p177 = por %p175, %p176
    %p179 = scmp.ne.s32.totalorder %s162, %s178
    %p180 = scmp.eq.s32.totalorder %s20, 0
    %p181 = por %p179, %p180
    %s182 = ssub.s32 %s21, %s33
    %s183 = ssub.s32 %s22, %s29
    %s184 = sor.u32 %s182, %s183
    %p185 = scmp.eq.s32.totalorder %s184, 0
    %s187 = sadd.s32 %s186, 1
    %s188 = scalar_select %p185, %s186, %s187
    %p191 = pneg %p185
    %p192 = scmp.eq.s32.totalorder %s14, 1
    %p193 = por %p191, %p192
    %p194 = scmp.ne.s32.totalorder %s186, %s189
    %p195 = scmp.eq.s32.totalorder %s14, 0
    %p196 = por %p194, %p195
    %p197 = scmp.ne.s32.totalorder %s186, %s189
    %p198 = scmp.eq.s32.totalorder %s19, 1
    %p199 = por %p197, %p198
    %p200 = scmp.ne.s32.totalorder %s189, %s190
    %p201 = scmp.eq.s32.totalorder %s19, 0
    %p202 = por %p200, %p201
    %p203 = scmp.ne.s32.totalorder %s189, %s190
    %p204 = scmp.eq.s32.totalorder %s20, 1
    %p205 = por %p203, %p204
    %p207 = scmp.ne.s32.totalorder %s190, %s206
    %p208 = scmp.eq.s32.totalorder %s20, 0
    %p209 = por %p207, %p208
    %s210 = ssub.s32 %s21, %s33
    %s211 = ssub.s32 %s22, %s29
    %s212 = sor.u32 %s210, %s211
    %p213 = scmp.eq.s32.totalorder %s212, 0
    %s215 = sadd.s32 %s214, 1
    %s216 = scalar_select %p213, %s214, %s215
    %p219 = pneg %p213
    %p220 = scmp.eq.s32.totalorder %s14, 1
    %p221 = por %p219, %p220
    %p222 = scmp.ne.s32.totalorder %s214, %s217
    %p223 = scmp.eq.s32.totalorder %s14, 0
    %p224 = por %p222, %p223
    %p225 = scmp.ne.s32.totalorder %s214, %s217
    %p226 = scmp.eq.s32.totalorder %s19, 1
    %p227 = por %p225, %p226
    %p228 = scmp.ne.s32.totalorder %s217, %s218
    %p229 = scmp.eq.s32.totalorder %s19, 0
    %p230 = por %p228, %p229
    %p231 = scmp.ne.s32.totalorder %s217, %s218
    %p232 = scmp.eq.s32.totalorder %s20, 1
    %p233 = por %p231, %p232
    %p235 = scmp.ne.s32.totalorder %s218, %s234
    %p236 = scmp.eq.s32.totalorder %s20, 0
    %p237 = por %p235, %p236
    %p238 = scmp.le.s32.totalorder 1, %s14
    %p239 = scmp.lt.s32.totalorder %s14, 3
    %p240 = pnand %p238, %p239
    %p241 = pneg %p240
    // Predicated region
    $region9: #{convlstm_cell_forward.1} parent=5 // pred_check
      _
    $region10: #{convlstm_cell_forward.1} parent=5 // pred_check_branch
      %243 = sbr.rel (%p240) target = $region12
    $region11: #{convlstm_cell_forward.1} parent=5 // pred_region
      %s244 = ssub.s32 %s14, 1
      // Predicated region
      $region13: #{convlstm_cell_forward.1} parent=11 // pred_check
        %p245 = pneg %p127
      $region14: #{convlstm_cell_forward.1} parent=11 // pred_check_branch
        %247 = sbr.rel (%p245) target = $region16
      $region15: #{convlstm_cell_forward.1} parent=11 // pred_region
        _
      $region16: #{convlstm_cell_forward.1} parent=11 // pred_fallthru
        _
      // Predicated region
      $region17: #{convlstm_cell_forward.1} parent=11 // pred_check
        %p248 = pneg %p148
      $region18: #{convlstm_cell_forward.1} parent=11 // pred_check_branch
        %250 = sbr.rel (%p248) target = $region20
      $region19: #{convlstm_cell_forward.1} parent=11 // pred_region
        _
      $region20: #{convlstm_cell_forward.1} parent=11 // pred_fallthru
        _
      // Predicated region
      $region21: #{convlstm_cell_forward.1} parent=11 // pred_check
        %p251 = pneg %p174
      $region22: #{convlstm_cell_forward.1} parent=11 // pred_check_branch
        %253 = sbr.rel (%p251) target = $region24
      $region23: #{convlstm_cell_forward.1} parent=11 // pred_region
        %s254 = smul.u32 2, %s24
        %p255 = scmp.lt.s32.totalorder %s254, 1
        %s256 = scalar_select %p255, %s254, 1
        %s257 = smul.addr %s256, 4
        %s258 = scalar_lea.vmem %s5, %s257
        %s259 = smul.u32 2, %s24
      $region24: #{convlstm_cell_forward.1} parent=11 // pred_fallthru
        _
    $region12: #{convlstm_cell_forward.1} parent=5 // pred_fallthru
      _
    %p260 = scmp.lt.s32.totalorder %s14, 2
    // Predicated region
    $region25: #{convlstm_cell_forward.1} parent=5 // pred_check
      %p261 = pneg %p260
    $region26: #{convlstm_cell_forward.1} parent=5 // pred_check_branch
      %263 = sbr.rel (%p261) target = $region28
    $region27: #{convlstm_cell_forward.1} parent=5 // pred_region
      // Predicated region
      $region29: #{convlstm_cell_forward.1} parent=27 // pred_check
        %p264 = pneg %p46
      $region30: #{convlstm_cell_forward.1} parent=27 // pred_check_branch
        %266 = sbr.rel (%p264) target = $region32
      $region31: #{convlstm_cell_forward.1} parent=27 // pred_region
        %p267 = scmp.lt.s32.totalorder %s21, 1
        %s268 = scalar_select %p267, %s21, 1
        %s269 = smul.addr %s268, 2
        %s270 = smul.addr %s269, 4
        %s271 = scalar_lea.vmem %s0, %s270
      $region32: #{convlstm_cell_forward.1} parent=27 // pred_fallthru
        _
      // Predicated region
      $region33: #{convlstm_cell_forward.1} parent=27 // pred_check
        %p272 = pneg %p72
      $region34: #{convlstm_cell_forward.1} parent=27 // pred_check_branch
        %274 = sbr.rel (%p272) target = $region36
      $region35: #{convlstm_cell_forward.1} parent=27 // pred_region
        %p275 = scmp.lt.s32.totalorder %s21, 1
        %s276 = scalar_select %p275, %s21, 1
        %s277 = smul.addr %s276, 8
        %s278 = smul.addr %s277, 8
        %s279 = scalar_lea.vmem %s1, %s278
      $region36: #{convlstm_cell_forward.1} parent=27 // pred_fallthru
        _
      // Predicated region
      $region37: #{convlstm_cell_forward.1} parent=27 // pred_check
        %p280 = pneg %p100
      $region38: #{convlstm_cell_forward.1} parent=27 // pred_check_branch
        %282 = sbr.rel (%p280) target = $region40
      $region39: #{convlstm_cell_forward.1} parent=27 // pred_region
        %s283 = smul.u32 2, %s22
        %p284 = scmp.lt.s32.totalorder %s21, 1
        %s285 = scalar_select %p284, %s21, 1
        %p286 = scmp.lt.s32.totalorder %s283, 1
        %s287 = scalar_select %p286, %s283, 1
        %s288 = smul.addr %s285, 8
        %s289 = sadd.s32 %s287, %s288
        %s290 = smul.addr %s289, 8
        %s291 = scalar_lea.vmem %s2, %s290
        %s292 = smul.u32 2, %s22
      $region40: #{convlstm_cell_forward.1} parent=27 // pred_fallthru
        _
    $region28: #{convlstm_cell_forward.1} parent=5 // pred_fallthru
      _
    %p293 = scmp.le.s32.totalorder 1, %s14
    %p294 = scmp.lt.s32.totalorder %s14, 3
    %p295 = pnand %p293, %p294
    %p296 = pneg %p295
    // Predicated region
    $region41: #{convlstm_cell_forward.1} parent=5 // pred_check
      _
    $region42: #{convlstm_cell_forward.1} parent=5 // pred_check_branch
      %298 = sbr.rel (%p295) target = $region44
    $region43: #{convlstm_cell_forward.1} parent=5 // pred_region
      %s299 = ssub.s32 %s14, 1
      %p300 = scmp.lt.s32.totalorder %s23, 1
      %s301 = scalar_select %p300, %s23, 1
      %s302 = smul.addr %s301, 2
      %s303 = smul.addr %s302, 4
      %s304 = scalar_lea.vmem %s0, %s303
      %p305 = pneg %p52
      %p306 = pneg %p49
      %p307 = scmp.lt.s32.totalorder %s23, 1
      %s308 = scalar_select %p307, %s23, 1
      %s309 = smul.addr %s308, 8
      %s310 = smul.addr %s309, 8
      %s311 = scalar_lea.vmem %s1, %s310
      %p312 = pneg %p78
      %p313 = pneg %p75
      %s314 = smul.u32 2, %s24
      %p315 = scmp.lt.s32.totalorder %s23, 1
      %s316 = scalar_select %p315, %s23, 1
      %p317 = scmp.lt.s32.totalorder %s314, 1
      %s318 = scalar_select %p317, %s314, 1
      %s319 = smul.addr %s316, 8
      %s320 = sadd.s32 %s318, %s319
      %s321 = smul.addr %s320, 8
      %s322 = scalar_lea.vmem %s2, %s321
      %p323 = pneg %p106
      %p324 = pneg %p103
      %p325 = pneg %p127
      %p326 = pneg %p124
      %p327 = pneg %p148
      %p328 = pneg %p145
      %s329 = smul.u32 2, %s24
      %p330 = scmp.lt.s32.totalorder %s329, 1
      %s331 = scalar_select %p330, %s329, 1
      %s332 = smul.addr %s331, 4
      %s333 = scalar_lea.vmem %s5, %s332
      %p334 = pneg %p174
      %p335 = pneg %p171
      %p336 = pneg %p202
      %p337 = pneg %p199
      %s338 = smul.u32 2, %s24
      %p339 = scmp.lt.s32.totalorder %s23, 1
      %s340 = scalar_select %p339, %s23, 1
      %p341 = scmp.lt.s32.totalorder %s338, 1
      %s342 = scalar_select %p341, %s338, 1
      %s343 = smul.addr %s340, 8
      %s344 = sadd.s32 %s342, %s343
      %s345 = smul.addr %s344, 8
      %s346 = scalar_lea.vmem %s6, %s345
      %p347 = pneg %p230
      %p348 = pneg %p227
      %s349 = smul.u32 2, %s24
      %p350 = scmp.lt.s32.totalorder %s23, 1
      %s351 = scalar_select %p350, %s23, 1
      %p352 = scmp.lt.s32.totalorder %s349, 1
      %s353 = scalar_select %p352, %s349, 1
      %s354 = smul.addr %s351, 8
      %s355 = sadd.s32 %s353, %s354
      %s356 = smul.addr %s355, 8
      %s357 = scalar_lea.vmem %s7, %s356
      %p358 = scmp.lt.s32.totalorder %s23, 1
      %s359 = scalar_select %p358, %s23, 1
      %s360 = smul.addr %s359, 2
      %s361 = smul.addr %s360, 4
      %s362 = scalar_lea.vmem %s0, %s361
      %p363 = scmp.lt.s32.totalorder %s23, 1
      %s364 = scalar_select %p363, %s23, 1
      %s365 = smul.addr %s364, 8
      %s366 = smul.addr %s365, 8
      %s367 = scalar_lea.vmem %s1, %s366
      %s368 = smul.u32 2, %s24
      %p369 = scmp.lt.s32.totalorder %s23, 1
      %s370 = scalar_select %p369, %s23, 1
      %p371 = scmp.lt.s32.totalorder %s368, 1
      %s372 = scalar_select %p371, %s368, 1
      %s373 = smul.addr %s370, 8
      %s374 = sadd.s32 %s372, %s373
      %s375 = smul.addr %s374, 8
      %s376 = scalar_lea.vmem %s2, %s375
      %s377 = smul.u32 2, %s24
      %s378 = smul.u32 2, %s24
      %p379 = scmp.lt.s32.totalorder %s378, 1
      %s380 = scalar_select %p379, %s378, 1
      %s381 = smul.addr %s380, 4
      %s382 = scalar_lea.vmem %s5, %s381
      %s383 = smul.u32 2, %s24
      %s384 = smul.u32 2, %s24
      %p385 = scmp.lt.s32.totalorder %s23, 1
      %s386 = scalar_select %p385, %s23, 1
      %p387 = scmp.lt.s32.totalorder %s384, 1
      %s388 = scalar_select %p387, %s384, 1
      %s389 = smul.addr %s386, 8
      %s390 = sadd.s32 %s388, %s389
      %s391 = smul.addr %s390, 8
      %s392 = scalar_lea.vmem %s6, %s391
      %s393 = smul.u32 2, %s24
      %s394 = smul.u32 2, %s24
      %p395 = scmp.lt.s32.totalorder %s23, 1
      %s396 = scalar_select %p395, %s23, 1
      %p397 = scmp.lt.s32.totalorder %s394, 1
      %s398 = scalar_select %p397, %s394, 1
      %s399 = smul.addr %s396, 8
      %s400 = sadd.s32 %s398, %s399
      %s401 = smul.addr %s400, 8
      %s402 = scalar_lea.vmem %s7, %s401
      %s403 = smul.u32 2, %s24
      %p405 = scmp.eq.s32.totalorder %s24, 0
      // Predicated region
      $region45: #{convlstm_cell_forward.1} parent=43 // pred_check
        %p406 = pneg %p405
      $region46: #{convlstm_cell_forward.1} parent=43 // pred_check_branch
        %408 = sbr.rel (%p406) target = $region48
      $region47: #{convlstm_cell_forward.1} parent=43 // pred_region
        %409 = vst [vmem:[#allocation2] sm:$0xff] 0.0
        %410 = vst [vmem:[#allocation2 + $0x20] sm:$0xff] 0.0
        %411 = vst [vmem:[#allocation2 + $0x40] sm:$0xff] 0.0
        %412 = vst [vmem:[#allocation2 + $0x60] sm:$0xff] 0.0
        %413 = vst [vmem:[#allocation2 + $0x80] sm:$0xff] 0.0
        %414 = vst [vmem:[#allocation2 + $0x18] sm:$0xff] 0.0
        %415 = vst [vmem:[#allocation2 + $0x38] sm:$0xff] 0.0
        %416 = vst [vmem:[#allocation2 + $0x58] sm:$0xff] 0.0
        %417 = vst [vmem:[#allocation2 + $0x78] sm:$0xff] 0.0
        %418 = vst [vmem:[#allocation2 + $0x98] sm:$0xff] 0.0
        %v419 = vld [vmem:[%s367] sm:$0xff]
        %v420 = vld [vmem:[%s367 + $0x8] sm:$0xff]
        %v421 = vld [vmem:[%s367 + $0x10] sm:$0xff]
        %v422 = vld [vmem:[%s367 + $0x18] sm:$0xff]
        %v423 = vld [vmem:[%s367 + $0x20] sm:$0xff]
        %v424 = vld [vmem:[%s367 + $0x28] sm:$0xff]
        %v425 = vld [vmem:[%s367 + $0x30] sm:$0xff]
        %v426 = vld [vmem:[%s367 + $0x38] sm:$0xff]
        %427 = vst [vmem:[#allocation2 + $0x8] sm:$0xff] %v419
        %428 = vst [vmem:[#allocation2 + $0x10] sm:$0xff] %v420
        %429 = vst [vmem:[#allocation2 + $0x28] sm:$0xff] %v421
        %430 = vst [vmem:[#allocation2 + $0x30] sm:$0xff] %v422
        %431 = vst [vmem:[#allocation2 + $0x48] sm:$0xff] %v423
        %432 = vst [vmem:[#allocation2 + $0x50] sm:$0xff] %v424
        %433 = vst [vmem:[#allocation2 + $0x68] sm:$0xff] %v425
        %434 = vst [vmem:[#allocation2 + $0x70] sm:$0xff] %v426
        %v435 = vld [vmem:[%s362] sm:$0xff]
        %v437 = vcombine.high %v435, %v435
        %439 = vst [vmem:[#allocation2 + $0x88] sm:$0xf] %v435
        %440 = vst [vmem:[#allocation2 + $0x90] sm:$0xf] %v437
        %441 = vst [vmem:[#allocation2 + $0x88] sm:$0xf0] 0.0
        %442 = vst [vmem:[#allocation2 + $0x90] sm:$0xf0] 0.0
      $region48: #{convlstm_cell_forward.1} parent=43 // pred_fallthru
        _
      %v443 = vld [vmem:[%s382] ss:$4 sm:$0x3]
      %v445 = vlaneseq
      %v446 = vshrl.u32 %v445, 7
      %v447 = vsub.s32 0, %v446
      %v448 = vrot.slane %v443, %v447
      %v449 = vlaneseq
      %v450 = vshrl.u32 %v449, 7
      %v451 = vsub.s32 1, %v450
      %v452 = vrot.slane %v443, %v451
      %s453 = scalar_lea.vmem %s382, 2
      %v454 = vld [vmem:[%s453] ss:$4 sm:$0x3]
      %v456 = vlaneseq
      %v457 = vshrl.u32 %v456, 7
      %v458 = vsub.s32 0, %v457
      %v459 = vrot.slane %v454, %v458
      %v460 = vlaneseq
      %v461 = vshrl.u32 %v460, 7
      %v462 = vsub.s32 1, %v461
      %v463 = vrot.slane %v454, %v462
      %v464 = vld [vmem:[#allocation2] sm:$0xff]
      %v465 = vld [vmem:[#allocation2 + $0x8] sm:$0xff]
      %v466 = vld [vmem:[#allocation2 + $0x10] sm:$0xff]
      %v467 = vld [vmem:[#allocation2 + $0x20] sm:$0xff]
      %v468 = vld [vmem:[#allocation2 + $0x28] sm:$0xff]
      %v469 = vld [vmem:[#allocation2 + $0x30] sm:$0xff]
      %v470 = vld [vmem:[#allocation2 + $0x40] sm:$0xff]
      %v471 = vld [vmem:[#allocation2 + $0x48] sm:$0xff]
      %v472 = vld [vmem:[#allocation2 + $0x50] sm:$0xff]
      %v473 = vld [vmem:[#allocation2 + $0x60] sm:$0xff]
      %v474 = vld [vmem:[#allocation2 + $0x68] sm:$0xff]
      %v475 = vld [vmem:[#allocation2 + $0x70] sm:$0xff]
      %v476 = vld [vmem:[#allocation2 + $0x80] sm:$0xff]
      %v477 = vld [vmem:[#allocation2 + $0x88] sm:$0xff]
      %v478 = vld [vmem:[#allocation2 + $0x90] sm:$0xff]
      %479 = vrot.lane.b32.xlu0 %v448, 111
      %v480 = vpop.permute.xlu0 %479
      %481 = vrot.lane.b32.xlu0 %v452, 111
      %v482 = vpop.permute.xlu0 %481
      %vm483 = vcmask 908288
      %v484 = vsel %vm483, %v480, %v482
      %v488 = vmul.f32 %v464, %v480
      %v489 = vmul.f32 %v465, %v484
      %v490 = vmul.f32 %v466, %v482
      %v491 = vmul.f32 %v467, %v480
      %v492 = vmul.f32 %v468, %v484
      %v493 = vmul.f32 %v469, %v482
      %v494 = vmul.f32 %v470, %v480
      %v495 = vmul.f32 %v471, %v484
      %v496 = vmul.f32 %v472, %v482
      %v497 = vmul.f32 %v473, %v480
      %v498 = vmul.f32 %v474, %v484
      %v499 = vmul.f32 %v475, %v482
      %v500 = vmul.f32 %v476, %v480
      %v501 = vmul.f32 %v477, %v484
      %v502 = vmul.f32 %v478, %v482
      %v503 = vpack.c.bf16 %v491, %v488
      %v504 = vpack.c.bf16 %v492, %v489
      %v505 = vpack.c.bf16 %v493, %v490
      %v506 = vpack.c.bf16 %v497, %v494
      %v507 = vpack.c.bf16 %v498, %v495
      %v508 = vpack.c.bf16 %v499, %v496
      %v509 = vpack.c.bf16 %v500, %v500
      %v510 = vpack.c.bf16 %v501, %v501
      %v511 = vpack.c.bf16 %v502, %v502
      %v521 = vunpack.c.l.b16 %v503
      %v522 = vunpack.c.l.b16 %v504
      %v523 = vunpack.c.l.b16 %v505
      %v524 = vunpack.c.h.b16 %v503
      %v525 = vunpack.c.h.b16 %v504
      %v526 = vunpack.c.h.b16 %v505
      %v527 = vunpack.c.l.b16 %v506
      %v528 = vunpack.c.l.b16 %v507
      %v529 = vunpack.c.l.b16 %v508
      %v530 = vunpack.c.h.b16 %v506
      %v531 = vunpack.c.h.b16 %v507
      %v532 = vunpack.c.h.b16 %v508
      %v533 = vunpack.c.l.b16 %v509
      %v534 = vunpack.c.l.b16 %v510
      %v535 = vunpack.c.l.b16 %v511
      %v536 = vpack.c.b16 %v522, %v521
      %v537 = vpack.c.b16 %v523, %v523
      %v538 = vpack.c.b16 %v525, %v524
      %v539 = vpack.c.b16 %v526, %v526
      %v540 = vpack.c.b16 %v528, %v527
      %v541 = vpack.c.b16 %v529, %v529
      %v542 = vpack.c.b16 %v531, %v530
      %v543 = vpack.c.b16 %v532, %v532
      %v544 = vpack.c.b16 %v534, %v533
      %v545 = vpack.c.b16 %v535, %v535
      %546 = vrot.lane.b32.xlu0 %v536, 17
      %v547 = vpop.permute.xlu0 %546
      %548 = vrot.lane.b32.xlu0 %v537, 17
      %v549 = vpop.permute.xlu0 %548
      %550 = vrot.lane.b32.xlu0 %v538, 17
      %v551 = vpop.permute.xlu0 %550
      %552 = vrot.lane.b32.xlu0 %v539, 17
      %v553 = vpop.permute.xlu0 %552
      %554 = vrot.lane.b32.xlu0 %v540, 17
      %v555 = vpop.permute.xlu0 %554
      %556 = vrot.lane.b32.xlu0 %v541, 17
      %v557 = vpop.permute.xlu0 %556
      %558 = vrot.lane.b32.xlu0 %v542, 17
      %v559 = vpop.permute.xlu0 %558
      %560 = vrot.lane.b32.xlu0 %v543, 17
      %v561 = vpop.permute.xlu0 %560
      %562 = vrot.lane.b32.xlu0 %v544, 17
      %v563 = vpop.permute.xlu0 %562
      %564 = vrot.lane.b32.xlu0 %v545, 17
      %v565 = vpop.permute.xlu0 %564
      %v566 = vrot.slane %v547, 4
      %v567 = vrot.slane %v549, 4
      %v568 = vrot.slane %v551, 4
      %v569 = vrot.slane %v553, 4
      %v570 = vrot.slane %v555, 4
      %v571 = vrot.slane %v557, 4
      %v572 = vrot.slane %v559, 4
      %v573 = vrot.slane %v561, 4
      %v574 = vrot.slane %v563, 4
      %v575 = vrot.slane %v565, 4
      %vm576 = vcmask 1043456
      %v577 = vsel %vm576, %v566, %v567
      %vm578 = vcmask 138240
      %v579 = vsel %vm578, %v547, %v577
      %v580 = vsel %vm576, %v568, %v569
      %v581 = vsel %vm578, %v551, %v580
      %v582 = vsel %vm576, %v570, %v571
      %v583 = vsel %vm578, %v555, %v582
      %v584 = vsel %vm576, %v572, %v573
      %v585 = vsel %vm578, %v559, %v584
      %v586 = vsel %vm576, %v574, %v575
      %v587 = vsel %vm578, %v563, %v586
      %593 = vst [vmem:[#allocation3] sm:$0xff] %v579
      %594 = vst [vmem:[#allocation3 + $0x8] sm:$0xff] %v581
      %595 = vst [vmem:[#allocation3 + $0x10] sm:$0xff] %v583
      %596 = vst [vmem:[#allocation3 + $0x18] sm:$0xff] %v585
      %597 = vst [vmem:[#allocation3 + $0x20] sm:$0xff] %v587
      %v598 = vld [vmem:[#allocation2] sm:$0xff]
      %v599 = vld [vmem:[#allocation2 + $0x8] sm:$0xff]
      %v600 = vld [vmem:[#allocation2 + $0x10] sm:$0xff]
      %v601 = vld [vmem:[#allocation2 + $0x20] sm:$0xff]
      %v602 = vld [vmem:[#allocation2 + $0x28] sm:$0xff]
      %v603 = vld [vmem:[#allocation2 + $0x30] sm:$0xff]
      %v604 = vld [vmem:[#allocation2 + $0x40] sm:$0xff]
      %v605 = vld [vmem:[#allocation2 + $0x48] sm:$0xff]
      %v606 = vld [vmem:[#allocation2 + $0x50] sm:$0xff]
      %v607 = vld [vmem:[#allocation2 + $0x60] sm:$0xff]
      %v608 = vld [vmem:[#allocation2 + $0x68] sm:$0xff]
      %v609 = vld [vmem:[#allocation2 + $0x70] sm:$0xff]
      %v610 = vld [vmem:[#allocation2 + $0x80] sm:$0xff]
      %v611 = vld [vmem:[#allocation2 + $0x88] sm:$0xff]
      %v612 = vld [vmem:[#allocation2 + $0x90] sm:$0xff]
      %v613 = vpack.c.bf16 %v601, %v598
      %v614 = vpack.c.bf16 %v602, %v599
      %v615 = vpack.c.bf16 %v603, %v600
      %v616 = vpack.c.bf16 %v607, %v604
      %v617 = vpack.c.bf16 %v608, %v605
      %v618 = vpack.c.bf16 %v609, %v606
      %v619 = vpack.c.bf16 %v610, %v610
      %v620 = vpack.c.bf16 %v611, %v611
      %v621 = vpack.c.bf16 %v612, %v612
      %v631 = vunpack.c.l.b16 %v613
      %v632 = vunpack.c.l.b16 %v614
      %v633 = vunpack.c.l.b16 %v615
      %v634 = vunpack.c.h.b16 %v613
      %v635 = vunpack.c.h.b16 %v614
      %v636 = vunpack.c.h.b16 %v615
      %v637 = vunpack.c.l.b16 %v616
      %v638 = vunpack.c.l.b16 %v617
      %v639 = vunpack.c.l.b16 %v618
      %v640 = vunpack.c.h.b16 %v616
      %v641 = vunpack.c.h.b16 %v617
      %v642 = vunpack.c.h.b16 %v618
      %v643 = vunpack.c.l.b16 %v619
      %v644 = vunpack.c.l.b16 %v620
      %v645 = vunpack.c.l.b16 %v621
      %v646 = vpack.c.b16 %v632, %v631
      %v647 = vpack.c.b16 %v633, %v633
      %v648 = vpack.c.b16 %v635, %v634
      %v649 = vpack.c.b16 %v636, %v636
      %v650 = vpack.c.b16 %v638, %v637
      %v651 = vpack.c.b16 %v639, %v639
      %v652 = vpack.c.b16 %v641, %v640
      %v653 = vpack.c.b16 %v642, %v642
      %v654 = vpack.c.b16 %v644, %v643
      %v655 = vpack.c.b16 %v645, %v645
      %656 = vrot.lane.b32.xlu0 %v646, 16
      %v657 = vpop.permute.xlu0 %656
      %658 = vrot.lane.b32.xlu0 %v647, 16
      %v659 = vpop.permute.xlu0 %658
      %660 = vrot.lane.b32.xlu0 %v648, 16
      %v661 = vpop.permute.xlu0 %660
      %662 = vrot.lane.b32.xlu0 %v649, 16
      %v663 = vpop.permute.xlu0 %662
      %664 = vrot.lane.b32.xlu0 %v650, 16
      %v665 = vpop.permute.xlu0 %664
      %666 = vrot.lane.b32.xlu0 %v651, 16
      %v667 = vpop.permute.xlu0 %666
      %668 = vrot.lane.b32.xlu0 %v652, 16
      %v669 = vpop.permute.xlu0 %668
      %670 = vrot.lane.b32.xlu0 %v653, 16
      %v671 = vpop.permute.xlu0 %670
      %672 = vrot.lane.b32.xlu0 %v654, 16
      %v673 = vpop.permute.xlu0 %672
      %674 = vrot.lane.b32.xlu0 %v655, 16
      %v675 = vpop.permute.xlu0 %674
      %v676 = vrot.slane %v657, 4
      %v677 = vrot.slane %v659, 4
      %v678 = vrot.slane %v661, 4
      %v679 = vrot.slane %v663, 4
      %v680 = vrot.slane %v665, 4
      %v681 = vrot.slane %v667, 4
      %v682 = vrot.slane %v669, 4
      %v683 = vrot.slane %v671, 4
      %v684 = vrot.slane %v673, 4
      %v685 = vrot.slane %v675, 4
      %v686 = vsel %vm576, %v676, %v677
      %vm687 = vcmask 130048
      %v688 = vsel %vm687, %v657, %v686
      %v689 = vsel %vm576, %v678, %v679
      %v690 = vsel %vm687, %v661, %v689
      %v691 = vsel %vm576, %v680, %v681
      %v692 = vsel %vm687, %v665, %v691
      %v693 = vsel %vm576, %v682, %v683
      %v694 = vsel %vm687, %v669, %v693
      %v695 = vsel %vm576, %v684, %v685
      %v696 = vsel %vm687, %v673, %v695
      %702 = vst [vmem:[#allocation3 + $0x28] sm:$0xff] %v688
      %703 = vst [vmem:[#allocation3 + $0x30] sm:$0xff] %v690
      %704 = vst [vmem:[#allocation3 + $0x38] sm:$0xff] %v692
      %705 = vst [vmem:[#allocation3 + $0x40] sm:$0xff] %v694
      %706 = vst [vmem:[#allocation3 + $0x48] sm:$0xff] %v696
      %v707 = vld [vmem:[#allocation2] sm:$0xff]
      %v708 = vld [vmem:[#allocation2 + $0x8] sm:$0xff]
      %v709 = vld [vmem:[#allocation2 + $0x10] sm:$0xff]
      %v710 = vld [vmem:[#allocation2 + $0x20] sm:$0xff]
      %v711 = vld [vmem:[#allocation2 + $0x28] sm:$0xff]
      %v712 = vld [vmem:[#allocation2 + $0x30] sm:$0xff]
      %v713 = vld [vmem:[#allocation2 + $0x40] sm:$0xff]
      %v714 = vld [vmem:[#allocation2 + $0x48] sm:$0xff]
      %v715 = vld [vmem:[#allocation2 + $0x50] sm:$0xff]
      %v716 = vld [vmem:[#allocation2 + $0x60] sm:$0xff]
      %v717 = vld [vmem:[#allocation2 + $0x68] sm:$0xff]
      %v718 = vld [vmem:[#allocation2 + $0x70] sm:$0xff]
      %v719 = vld [vmem:[#allocation2 + $0x80] sm:$0xff]
      %v720 = vld [vmem:[#allocation2 + $0x88] sm:$0xff]
      %v721 = vld [vmem:[#allocation2 + $0x90] sm:$0xff]
      %722 = vrot.lane.b32.xlu0 %v459, 113
      %v723 = vpop.permute.xlu0 %722
      %724 = vrot.lane.b32.xlu0 %v463, 113
      %v725 = vpop.permute.xlu0 %724
      %vm726 = vcmask 924672
      %v727 = vsel %vm726, %v723, %v725
      %v731 = vmul.f32 %v707, %v723
      %v732 = vmul.f32 %v708, %v727
      %v733 = vmul.f32 %v709, %v725
      %v734 = vmul.f32 %v710, %v723
      %v735 = vmul.f32 %v711, %v727
      %v736 = vmul.f32 %v712, %v725
      %v737 = vmul.f32 %v713, %v723
      %v738 = vmul.f32 %v714, %v727
      %v739 = vmul.f32 %v715, %v725
      %v740 = vmul.f32 %v716, %v723
      %v741 = vmul.f32 %v717, %v727
      %v742 = vmul.f32 %v718, %v725
      %v743 = vmul.f32 %v719, %v723
      %v744 = vmul.f32 %v720, %v727
      %v745 = vmul.f32 %v721, %v725
      %v746 = vpack.c.bf16 %v734, %v731
      %v747 = vpack.c.bf16 %v735, %v732
      %v748 = vpack.c.bf16 %v736, %v733
      %v749 = vpack.c.bf16 %v740, %v737
      %v750 = vpack.c.bf16 %v741, %v738
      %v751 = vpack.c.bf16 %v742, %v739
      %v752 = vpack.c.bf16 %v743, %v743
      %v753 = vpack.c.bf16 %v744, %v744
      %v754 = vpack.c.bf16 %v745, %v745
      %v764 = vunpack.c.l.b16 %v746
      %v765 = vunpack.c.l.b16 %v747
      %v766 = vunpack.c.l.b16 %v748
      %v767 = vunpack.c.h.b16 %v746
      %v768 = vunpack.c.h.b16 %v747
      %v769 = vunpack.c.h.b16 %v748
      %v770 = vunpack.c.l.b16 %v749
      %v771 = vunpack.c.l.b16 %v750
      %v772 = vunpack.c.l.b16 %v751
      %v773 = vunpack.c.h.b16 %v749
      %v774 = vunpack.c.h.b16 %v750
      %v775 = vunpack.c.h.b16 %v751
      %v776 = vunpack.c.l.b16 %v752
      %v777 = vunpack.c.l.b16 %v753
      %v778 = vunpack.c.l.b16 %v754
      %v779 = vpack.c.b16 %v765, %v764
      %v780 = vpack.c.b16 %v766, %v766
      %v781 = vpack.c.b16 %v768, %v767
      %v782 = vpack.c.b16 %v769, %v769
      %v783 = vpack.c.b16 %v771, %v770
      %v784 = vpack.c.b16 %v772, %v772
      %v785 = vpack.c.b16 %v774, %v773
      %v786 = vpack.c.b16 %v775, %v775
      %v787 = vpack.c.b16 %v777, %v776
      %v788 = vpack.c.b16 %v778, %v778
      %789 = vrot.lane.b32.xlu0 %v779, 15
      %v790 = vpop.permute.xlu0 %789
      %791 = vrot.lane.b32.xlu0 %v780, 15
      %v792 = vpop.permute.xlu0 %791
      %793 = vrot.lane.b32.xlu0 %v781, 15
      %v794 = vpop.permute.xlu0 %793
      %795 = vrot.lane.b32.xlu0 %v782, 15
      %v796 = vpop.permute.xlu0 %795
      %797 = vrot.lane.b32.xlu0 %v783, 15
      %v798 = vpop.permute.xlu0 %797
      %799 = vrot.lane.b32.xlu0 %v784, 15
      %v800 = vpop.permute.xlu0 %799
      %801 = vrot.lane.b32.xlu0 %v785, 15
      %v802 = vpop.permute.xlu0 %801
      %803 = vrot.lane.b32.xlu0 %v786, 15
      %v804 = vpop.permute.xlu0 %803
      %805 = vrot.lane.b32.xlu0 %v787, 15
      %v806 = vpop.permute.xlu0 %805
      %807 = vrot.lane.b32.xlu0 %v788, 15
      %v808 = vpop.permute.xlu0 %807
      %v809 = vrot.slane %v790, 4
      %v810 = vrot.slane %v792, 4
      %v811 = vrot.slane %v794, 4
      %v812 = vrot.slane %v796, 4
      %v813 = vrot.slane %v798, 4
      %v814 = vrot.slane %v800, 4
      %v815 = vrot.slane %v802, 4
      %v816 = vrot.slane %v804, 4
      %v817 = vrot.slane %v806, 4
      %v818 = vrot.slane %v808, 4
      %v819 = vsel %vm576, %v809, %v810
      %vm820 = vcmask 121856
      %v821 = vsel %vm820, %v790, %v819
      %v822 = vsel %vm576, %v811, %v812
      %v823 = vsel %vm820, %v794, %v822
      %v824 = vsel %vm576, %v813, %v814
      %v825 = vsel %vm820, %v798, %v824
      %v826 = vsel %vm576, %v815, %v816
      %v827 = vsel %vm820, %v802, %v826
      %v828 = vsel %vm576, %v817, %v818
      %v829 = vsel %vm820, %v806, %v828
      %835 = vst [vmem:[#allocation3 + $0x50] sm:$0xff] %v821
      %836 = vst [vmem:[#allocation3 + $0x58] sm:$0xff] %v823
      %837 = vst [vmem:[#allocation3 + $0x60] sm:$0xff] %v825
      %838 = vst [vmem:[#allocation3 + $0x68] sm:$0xff] %v827
      %839 = vst [vmem:[#allocation3 + $0x70] sm:$0xff] %v829
      %v840 = vld [vmem:[#allocation2] sm:$0xff]
      %v841 = vld [vmem:[#allocation2 + $0x8] sm:$0xff]
      %v842 = vld [vmem:[#allocation2 + $0x10] sm:$0xff]
      %v843 = vld [vmem:[#allocation2 + $0x20] sm:$0xff]
      %v844 = vld [vmem:[#allocation2 + $0x28] sm:$0xff]
      %v845 = vld [vmem:[#allocation2 + $0x30] sm:$0xff]
      %v846 = vld [vmem:[#allocation2 + $0x40] sm:$0xff]
      %v847 = vld [vmem:[#allocation2 + $0x48] sm:$0xff]
      %v848 = vld [vmem:[#allocation2 + $0x50] sm:$0xff]
      %v849 = vld [vmem:[#allocation2 + $0x60] sm:$0xff]
      %v850 = vld [vmem:[#allocation2 + $0x68] sm:$0xff]
      %v851 = vld [vmem:[#allocation2 + $0x70] sm:$0xff]
      %v852 = vld [vmem:[#allocation2 + $0x80] sm:$0xff]
      %v853 = vld [vmem:[#allocation2 + $0x88] sm:$0xff]
      %v854 = vld [vmem:[#allocation2 + $0x90] sm:$0xff]
      %855 = vrot.lane.b32.xlu0 %v448, 127
      %v856 = vpop.permute.xlu0 %855
      %857 = vrot.lane.b32.xlu0 %v452, 127
      %v858 = vpop.permute.xlu0 %857
      %vm859 = vcmask 1039360
      %v860 = vsel %vm859, %v856, %v858
      %v864 = vmul.f32 %v840, %v856
      %v865 = vmul.f32 %v841, %v860
      %v866 = vmul.f32 %v842, %v858
      %v867 = vmul.f32 %v843, %v856
      %v868 = vmul.f32 %v844, %v860
      %v869 = vmul.f32 %v845, %v858
      %v870 = vmul.f32 %v846, %v856
      %v871 = vmul.f32 %v847, %v860
      %v872 = vmul.f32 %v848, %v858
      %v873 = vmul.f32 %v849, %v856
      %v874 = vmul.f32 %v850, %v860
      %v875 = vmul.f32 %v851, %v858
      %v876 = vmul.f32 %v852, %v856
      %v877 = vmul.f32 %v853, %v860
      %v878 = vmul.f32 %v854, %v858
      %v879 = vpack.c.bf16 %v867, %v864
      %v880 = vpack.c.bf16 %v868, %v865
      %v881 = vpack.c.bf16 %v869, %v866
      %v882 = vpack.c.bf16 %v873, %v870
      %v883 = vpack.c.bf16 %v874, %v871
      %v884 = vpack.c.bf16 %v875, %v872
      %v885 = vpack.c.bf16 %v876, %v876
      %v886 = vpack.c.bf16 %v877, %v877
      %v887 = vpack.c.bf16 %v878, %v878
      %v897 = vunpack.c.l.b16 %v879
      %v898 = vunpack.c.l.b16 %v880
      %v899 = vunpack.c.l.b16 %v881
      %v900 = vunpack.c.h.b16 %v879
      %v901 = vunpack.c.h.b16 %v880
      %v902 = vunpack.c.h.b16 %v881
      %v903 = vunpack.c.l.b16 %v882
      %v904 = vunpack.c.l.b16 %v883
      %v905 = vunpack.c.l.b16 %v884
      %v906 = vunpack.c.h.b16 %v882
      %v907 = vunpack.c.h.b16 %v883
      %v908 = vunpack.c.h.b16 %v884
      %v909 = vunpack.c.l.b16 %v885
      %v910 = vunpack.c.l.b16 %v886
      %v911 = vunpack.c.l.b16 %v887
      %v912 = vpack.c.b16 %v898, %v897
      %v913 = vpack.c.b16 %v899, %v899
      %v914 = vpack.c.b16 %v901, %v900
      %v915 = vpack.c.b16 %v902, %v902
      %v916 = vpack.c.b16 %v904, %v903
      %v917 = vpack.c.b16 %v905, %v905
      %v918 = vpack.c.b16 %v907, %v906
      %v919 = vpack.c.b16 %v908, %v908
      %v920 = vpack.c.b16 %v910, %v909
      %v921 = vpack.c.b16 %v911, %v911
      %922 = vrot.lane.b32.xlu0 %v912, 1
      %v923 = vpop.permute.xlu0 %922
      %924 = vrot.lane.b32.xlu0 %v913, 1
      %v925 = vpop.permute.xlu0 %924
      %926 = vrot.lane.b32.xlu0 %v914, 1
      %v927 = vpop.permute.xlu0 %926
      %928 = vrot.lane.b32.xlu0 %v915, 1
      %v929 = vpop.permute.xlu0 %928
      %930 = vrot.lane.b32.xlu0 %v916, 1
      %v931 = vpop.permute.xlu0 %930
      %932 = vrot.lane.b32.xlu0 %v917, 1
      %v933 = vpop.permute.xlu0 %932
      %934 = vrot.lane.b32.xlu0 %v918, 1
      %v935 = vpop.permute.xlu0 %934
      %936 = vrot.lane.b32.xlu0 %v919, 1
      %v937 = vpop.permute.xlu0 %936
      %938 = vrot.lane.b32.xlu0 %v920, 1
      %v939 = vpop.permute.xlu0 %938
      %940 = vrot.lane.b32.xlu0 %v921, 1
      %v941 = vpop.permute.xlu0 %940
      %v942 = vrot.slane %v923, 4
      %v943 = vrot.slane %v925, 4
      %v944 = vrot.slane %v927, 4
      %v945 = vrot.slane %v929, 4
      %v946 = vrot.slane %v931, 4
      %v947 = vrot.slane %v933, 4
      %v948 = vrot.slane %v935, 4
      %v949 = vrot.slane %v937, 4
      %v950 = vrot.slane %v939, 4
      %v951 = vrot.slane %v941, 4
      %v952 = vsel %vm576, %v942, %v943
      %vm953 = vcmask 7168
      %v954 = vsel %vm953, %v923, %v952
      %v955 = vsel %vm576, %v944, %v945
      %v956 = vsel %vm953, %v927, %v955
      %v957 = vsel %vm576, %v946, %v947
      %v958 = vsel %vm953, %v931, %v957
      %v959 = vsel %vm576, %v948, %v949
      %v960 = vsel %vm953, %v935, %v959
      %v961 = vsel %vm576, %v950, %v951
      %v962 = vsel %vm953, %v939, %v961
      %968 = vst [vmem:[#allocation3 + $0x78] sm:$0xff] %v954
      %969 = vst [vmem:[#allocation3 + $0x80] sm:$0xff] %v956
      %970 = vst [vmem:[#allocation3 + $0x88] sm:$0xff] %v958
      %971 = vst [vmem:[#allocation3 + $0x90] sm:$0xff] %v960
      %972 = vst [vmem:[#allocation3 + $0x98] sm:$0xff] %v962
      %v973 = vld [vmem:[#allocation2 + $0x8] sm:$0xff]
      %v974 = vld [vmem:[#allocation2 + $0x10] sm:$0xff]
      %v975 = vld [vmem:[#allocation2 + $0x28] sm:$0xff]
      %v976 = vld [vmem:[#allocation2 + $0x30] sm:$0xff]
      %v977 = vld [vmem:[#allocation2 + $0x48] sm:$0xff]
      %v978 = vld [vmem:[#allocation2 + $0x50] sm:$0xff]
      %v979 = vld [vmem:[#allocation2 + $0x68] sm:$0xff]
      %v980 = vld [vmem:[#allocation2 + $0x70] sm:$0xff]
      %v981 = vld [vmem:[#allocation2 + $0x88] sm:$0xff]
      %v982 = vld [vmem:[#allocation2 + $0x90] sm:$0xff]
      %v983 = vpack.c.bf16 %v975, %v973
      %v984 = vpack.c.bf16 %v976, %v974
      %v985 = vpack.c.bf16 %v979, %v977
      %v986 = vpack.c.bf16 %v980, %v978
      %v987 = vpack.c.bf16 %v981, %v981
      %v988 = vpack.c.bf16 %v982, %v982
      %v995 = vunpack.c.l.b16 %v983
      %v996 = vunpack.c.l.b16 %v984
      %v997 = vunpack.c.h.b16 %v983
      %v998 = vunpack.c.h.b16 %v984
      %v999 = vunpack.c.l.b16 %v985
      %v1000 = vunpack.c.l.b16 %v986
      %v1001 = vunpack.c.h.b16 %v985
      %v1002 = vunpack.c.h.b16 %v986
      %v1003 = vunpack.c.l.b16 %v987
      %v1004 = vunpack.c.l.b16 %v988
      %v1005 = vpack.c.b16 %v996, %v995
      %v1006 = vpack.c.b16 %v998, %v997
      %v1007 = vpack.c.b16 %v1000, %v999
      %v1008 = vpack.c.b16 %v1002, %v1001
      %v1009 = vpack.c.b16 %v1004, %v1003
      %1015 = vst [vmem:[#allocation3 + $0xa0] sm:$0xff] %v1005
      %1016 = vst [vmem:[#allocation3 + $0xa8] sm:$0xff] %v1006
      %1017 = vst [vmem:[#allocation3 + $0xb0] sm:$0xff] %v1007
      %1018 = vst [vmem:[#allocation3 + $0xb8] sm:$0xff] %v1008
      %1019 = vst [vmem:[#allocation3 + $0xc0] sm:$0xff] %v1009
      %v1020 = vld [vmem:[#allocation2 + $0x8] sm:$0xff]
      %v1021 = vld [vmem:[#allocation2 + $0x10] sm:$0xff]
      %v1022 = vld [vmem:[#allocation2 + $0x18] sm:$0xff]
      %v1023 = vld [vmem:[#allocation2 + $0x28] sm:$0xff]
      %v1024 = vld [vmem:[#allocation2 + $0x30] sm:$0xff]
      %v1025 = vld [vmem:[#allocation2 + $0x38] sm:$0xff]
      %v1026 = vld [vmem:[#allocation2 + $0x48] sm:$0xff]
      %v1027 = vld [vmem:[#allocation2 + $0x50] sm:$0xff]
      %v1028 = vld [vmem:[#allocation2 + $0x58] sm:$0xff]
      %v1029 = vld [vmem:[#allocation2 + $0x68] sm:$0xff]
      %v1030 = vld [vmem:[#allocation2 + $0x70] sm:$0xff]
      %v1031 = vld [vmem:[#allocation2 + $0x78] sm:$0xff]
      %v1032 = vld [vmem:[#allocation2 + $0x88] sm:$0xff]
      %v1033 = vld [vmem:[#allocation2 + $0x90] sm:$0xff]
      %v1034 = vld [vmem:[#allocation2 + $0x98] sm:$0xff]
      %1035 = vrot.lane.b32.xlu0 %v459, 1
      %v1036 = vpop.permute.xlu0 %1035
      %1037 = vrot.lane.b32.xlu0 %v463, 1
      %v1038 = vpop.permute.xlu0 %1037
      %vm1039 = vcmask 7168
      %v1040 = vsel %vm1039, %v1036, %v1038
      %v1044 = vmul.f32 %v1020, %v1036
      %v1045 = vmul.f32 %v1021, %v1040
      %v1046 = vmul.f32 %v1022, %v1038
      %v1047 = vmul.f32 %v1023, %v1036
      %v1048 = vmul.f32 %v1024, %v1040
      %v1049 = vmul.f32 %v1025, %v1038
      %v1050 = vmul.f32 %v1026, %v1036
      %v1051 = vmul.f32 %v1027, %v1040
      %v1052 = vmul.f32 %v1028, %v1038
      %v1053 = vmul.f32 %v1029, %v1036
      %v1054 = vmul.f32 %v1030, %v1040
      %v1055 = vmul.f32 %v1031, %v1038
      %v1056 = vmul.f32 %v1032, %v1036
      %v1057 = vmul.f32 %v1033, %v1040
      %v1058 = vmul.f32 %v1034, %v1038
      %v1059 = vpack.c.bf16 %v1047, %v1044
      %v1060 = vpack.c.bf16 %v1048, %v1045
      %v1061 = vpack.c.bf16 %v1049, %v1046
      %v1062 = vpack.c.bf16 %v1053, %v1050
      %v1063 = vpack.c.bf16 %v1054, %v1051
      %v1064 = vpack.c.bf16 %v1055, %v1052
      %v1065 = vpack.c.bf16 %v1056, %v1056
      %v1066 = vpack.c.bf16 %v1057, %v1057
      %v1067 = vpack.c.bf16 %v1058, %v1058
      %v1077 = vunpack.c.l.b16 %v1059
      %v1078 = vunpack.c.l.b16 %v1060
      %v1079 = vunpack.c.l.b16 %v1061
      %v1080 = vunpack.c.h.b16 %v1059
      %v1081 = vunpack.c.h.b16 %v1060
      %v1082 = vunpack.c.h.b16 %v1061
      %v1083 = vunpack.c.l.b16 %v1062
      %v1084 = vunpack.c.l.b16 %v1063
      %v1085 = vunpack.c.l.b16 %v1064
      %v1086 = vunpack.c.h.b16 %v1062
      %v1087 = vunpack.c.h.b16 %v1063
      %v1088 = vunpack.c.h.b16 %v1064
      %v1089 = vunpack.c.l.b16 %v1065
      %v1090 = vunpack.c.l.b16 %v1066
      %v1091 = vunpack.c.l.b16 %v1067
      %v1092 = vpack.c.b16 %v1078, %v1077
      %v1093 = vpack.c.b16 %v1079, %v1079
      %v1094 = vpack.c.b16 %v1081, %v1080
      %v1095 = vpack.c.b16 %v1082, %v1082
      %v1096 = vpack.c.b16 %v1084, %v1083
      %v1097 = vpack.c.b16 %v1085, %v1085
      %v1098 = vpack.c.b16 %v1087, %v1086
      %v1099 = vpack.c.b16 %v1088, %v1088
      %v1100 = vpack.c.b16 %v1090, %v1089
      %v1101 = vpack.c.b16 %v1091, %v1091
      %1102 = vrot.lane.b32.xlu0 %v1092, 127
      %v1103 = vpop.permute.xlu0 %1102
      %1104 = vrot.lane.b32.xlu0 %v1093, 127
      %v1105 = vpop.permute.xlu0 %1104
      %1106 = vrot.lane.b32.xlu0 %v1094, 127
      %v1107 = vpop.permute.xlu0 %1106
      %1108 = vrot.lane.b32.xlu0 %v1095, 127
      %v1109 = vpop.permute.xlu0 %1108
      %1110 = vrot.lane.b32.xlu0 %v1096, 127
      %v1111 = vpop.permute.xlu0 %1110
      %1112 = vrot.lane.b32.xlu0 %v1097, 127
      %v1113 = vpop.permute.xlu0 %1112
      %1114 = vrot.lane.b32.xlu0 %v1098, 127
      %v1115 = vpop.permute.xlu0 %1114
      %1116 = vrot.lane.b32.xlu0 %v1099, 127
      %v1117 = vpop.permute.xlu0 %1116
      %1118 = vrot.lane.b32.xlu0 %v1100, 127
      %v1119 = vpop.permute.xlu0 %1118
      %1120 = vrot.lane.b32.xlu0 %v1101, 127
      %v1121 = vpop.permute.xlu0 %1120
      %v1122 = vrot.slane %v1103, 4
      %v1123 = vrot.slane %v1105, 4
      %v1124 = vrot.slane %v1107, 4
      %v1125 = vrot.slane %v1109, 4
      %v1126 = vrot.slane %v1111, 4
      %v1127 = vrot.slane %v1113, 4
      %v1128 = vrot.slane %v1115, 4
      %v1129 = vrot.slane %v1117, 4
      %v1130 = vrot.slane %v1119, 4
      %v1131 = vrot.slane %v1121, 4
      %v1132 = vsel %vm576, %v1122, %v1123
      %vm1133 = vcmask 1039360
      %v1134 = vsel %vm1133, %v1103, %v1132
      %v1135 = vsel %vm576, %v1124, %v1125
      %v1136 = vsel %vm1133, %v1107, %v1135
      %v1137 = vsel %vm576, %v1126, %v1127
      %v1138 = vsel %vm1133, %v1111, %v1137
      %v1139 = vsel %vm576, %v1128, %v1129
      %v1140 = vsel %vm1133, %v1115, %v1139
      %v1141 = vsel %vm576, %v1130, %v1131
      %v1142 = vsel %vm1133, %v1119, %v1141
      %1148 = vst [vmem:[#allocation3 + $0xc8] sm:$0xff] %v1134
      %1149 = vst [vmem:[#allocation3 + $0xd0] sm:$0xff] %v1136
      %1150 = vst [vmem:[#allocation3 + $0xd8] sm:$0xff] %v1138
      %1151 = vst [vmem:[#allocation3 + $0xe0] sm:$0xff] %v1140
      %1152 = vst [vmem:[#allocation3 + $0xe8] sm:$0xff] %v1142
      %v1153 = vld [vmem:[#allocation2 + $0x8] sm:$0xff]
      %v1154 = vld [vmem:[#allocation2 + $0x10] sm:$0xff]
      %v1155 = vld [vmem:[#allocation2 + $0x18] sm:$0xff]
      %v1156 = vld [vmem:[#allocation2 + $0x28] sm:$0xff]
      %v1157 = vld [vmem:[#allocation2 + $0x30] sm:$0xff]
      %v1158 = vld [vmem:[#allocation2 + $0x38] sm:$0xff]
      %v1159 = vld [vmem:[#allocation2 + $0x48] sm:$0xff]
      %v1160 = vld [vmem:[#allocation2 + $0x50] sm:$0xff]
      %v1161 = vld [vmem:[#allocation2 + $0x58] sm:$0xff]
      %v1162 = vld [vmem:[#allocation2 + $0x68] sm:$0xff]
      %v1163 = vld [vmem:[#allocation2 + $0x70] sm:$0xff]
      %v1164 = vld [vmem:[#allocation2 + $0x78] sm:$0xff]
      %v1165 = vld [vmem:[#allocation2 + $0x88] sm:$0xff]
      %v1166 = vld [vmem:[#allocation2 + $0x90] sm:$0xff]
      %v1167 = vld [vmem:[#allocation2 + $0x98] sm:$0xff]
      %1168 = vrot.lane.b32.xlu0 %v448, 15
      %v1169 = vpop.permute.xlu0 %1168
      %1170 = vrot.lane.b32.xlu0 %v452, 15
      %v1171 = vpop.permute.xlu0 %1170
      %vm1172 = vcmask 121856
      %v1173 = vsel %vm1172, %v1169, %v1171
      %v1177 = vmul.f32 %v1153, %v1169
      %v1178 = vmul.f32 %v1154, %v1173
      %v1179 = vmul.f32 %v1155, %v1171
      %v1180 = vmul.f32 %v1156, %v1169
      %v1181 = vmul.f32 %v1157, %v1173
      %v1182 = vmul.f32 %v1158, %v1171
      %v1183 = vmul.f32 %v1159, %v1169
      %v1184 = vmul.f32 %v1160, %v1173
      %v1185 = vmul.f32 %v1161, %v1171
      %v1186 = vmul.f32 %v1162, %v1169
      %v1187 = vmul.f32 %v1163, %v1173
      %v1188 = vmul.f32 %v1164, %v1171
      %v1189 = vmul.f32 %v1165, %v1169
      %v1190 = vmul.f32 %v1166, %v1173
      %v1191 = vmul.f32 %v1167, %v1171
      %v1192 = vpack.c.bf16 %v1180, %v1177
      %v1193 = vpack.c.bf16 %v1181, %v1178
      %v1194 = vpack.c.bf16 %v1182, %v1179
      %v1195 = vpack.c.bf16 %v1186, %v1183
      %v1196 = vpack.c.bf16 %v1187, %v1184
      %v1197 = vpack.c.bf16 %v1188, %v1185
      %v1198 = vpack.c.bf16 %v1189, %v1189
      %v1199 = vpack.c.bf16 %v1190, %v1190
      %v1200 = vpack.c.bf16 %v1191, %v1191
      %v1210 = vunpack.c.l.b16 %v1192
      %v1211 = vunpack.c.l.b16 %v1193
      %v1212 = vunpack.c.l.b16 %v1194
      %v1213 = vunpack.c.h.b16 %v1192
      %v1214 = vunpack.c.h.b16 %v1193
      %v1215 = vunpack.c.h.b16 %v1194
      %v1216 = vunpack.c.l.b16 %v1195
      %v1217 = vunpack.c.l.b16 %v1196
      %v1218 = vunpack.c.l.b16 %v1197
      %v1219 = vunpack.c.h.b16 %v1195
      %v1220 = vunpack.c.h.b16 %v1196
      %v1221 = vunpack.c.h.b16 %v1197
      %v1222 = vunpack.c.l.b16 %v1198
      %v1223 = vunpack.c.l.b16 %v1199
      %v1224 = vunpack.c.l.b16 %v1200
      %v1225 = vpack.c.b16 %v1211, %v1210
      %v1226 = vpack.c.b16 %v1212, %v1212
      %v1227 = vpack.c.b16 %v1214, %v1213
      %v1228 = vpack.c.b16 %v1215, %v1215
      %v1229 = vpack.c.b16 %v1217, %v1216
      %v1230 = vpack.c.b16 %v1218, %v1218
      %v1231 = vpack.c.b16 %v1220, %v1219
      %v1232 = vpack.c.b16 %v1221, %v1221
      %v1233 = vpack.c.b16 %v1223, %v1222
      %v1234 = vpack.c.b16 %v1224, %v1224
      %1235 = vrot.lane.b32.xlu0 %v1225, 113
      %v1236 = vpop.permute.xlu0 %1235
      %1237 = vrot.lane.b32.xlu0 %v1226, 113
      %v1238 = vpop.permute.xlu0 %1237
      %1239 = vrot.lane.b32.xlu0 %v1227, 113
      %v1240 = vpop.permute.xlu0 %1239
      %1241 = vrot.lane.b32.xlu0 %v1228, 113
      %v1242 = vpop.permute.xlu0 %1241
      %1243 = vrot.lane.b32.xlu0 %v1229, 113
      %v1244 = vpop.permute.xlu0 %1243
      %1245 = vrot.lane.b32.xlu0 %v1230, 113
      %v1246 = vpop.permute.xlu0 %1245
      %1247 = vrot.lane.b32.xlu0 %v1231, 113
      %v1248 = vpop.permute.xlu0 %1247
      %1249 = vrot.lane.b32.xlu0 %v1232, 113
      %v1250 = vpop.permute.xlu0 %1249
      %1251 = vrot.lane.b32.xlu0 %v1233, 113
      %v1252 = vpop.permute.xlu0 %1251
      %1253 = vrot.lane.b32.xlu0 %v1234, 113
      %v1254 = vpop.permute.xlu0 %1253
      %v1255 = vrot.slane %v1236, 4
      %v1256 = vrot.slane %v1238, 4
      %v1257 = vrot.slane %v1240, 4
      %v1258 = vrot.slane %v1242, 4
      %v1259 = vrot.slane %v1244, 4
      %v1260 = vrot.slane %v1246, 4
      %v1261 = vrot.slane %v1248, 4
      %v1262 = vrot.slane %v1250, 4
      %v1263 = vrot.slane %v1252, 4
      %v1264 = vrot.slane %v1254, 4
      %v1265 = vsel %vm576, %v1255, %v1256
      %vm1266 = vcmask 924672
      %v1267 = vsel %vm1266, %v1236, %v1265
      %v1268 = vsel %vm576, %v1257, %v1258
      %v1269 = vsel %vm1266, %v1240, %v1268
      %v1270 = vsel %vm576, %v1259, %v1260
      %v1271 = vsel %vm1266, %v1244, %v1270
      %v1272 = vsel %vm576, %v1261, %v1262
      %v1273 = vsel %vm1266, %v1248, %v1272
      %v1274 = vsel %vm576, %v1263, %v1264
      %v1275 = vsel %vm1266, %v1252, %v1274
      %1281 = vst [vmem:[#allocation3 + $0xf0] sm:$0xff] %v1267
      %1282 = vst [vmem:[#allocation3 + $0xf8] sm:$0xff] %v1269
      %1283 = vst [vmem:[#allocation3 + $0x100] sm:$0xff] %v1271
      %1284 = vst [vmem:[#allocation3 + $0x108] sm:$0xff] %v1273
      %1285 = vst [vmem:[#allocation3 + $0x110] sm:$0xff] %v1275
      %v1286 = vld [vmem:[#allocation2 + $0x8] sm:$0xff]
      %v1287 = vld [vmem:[#allocation2 + $0x10] sm:$0xff]
      %v1288 = vld [vmem:[#allocation2 + $0x18] sm:$0xff]
      %v1289 = vld [vmem:[#allocation2 + $0x28] sm:$0xff]
      %v1290 = vld [vmem:[#allocation2 + $0x30] sm:$0xff]
      %v1291 = vld [vmem:[#allocation2 + $0x38] sm:$0xff]
      %v1292 = vld [vmem:[#allocation2 + $0x48] sm:$0xff]
      %v1293 = vld [vmem:[#allocation2 + $0x50] sm:$0xff]
      %v1294 = vld [vmem:[#allocation2 + $0x58] sm:$0xff]
      %v1295 = vld [vmem:[#allocation2 + $0x68] sm:$0xff]
      %v1296 = vld [vmem:[#allocation2 + $0x70] sm:$0xff]
      %v1297 = vld [vmem:[#allocation2 + $0x78] sm:$0xff]
      %v1298 = vld [vmem:[#allocation2 + $0x88] sm:$0xff]
      %v1299 = vld [vmem:[#allocation2 + $0x90] sm:$0xff]
      %v1300 = vld [vmem:[#allocation2 + $0x98] sm:$0xff]
      %v1301 = vpack.c.bf16 %v1289, %v1286
      %v1302 = vpack.c.bf16 %v1290, %v1287
      %v1303 = vpack.c.bf16 %v1291, %v1288
      %v1304 = vpack.c.bf16 %v1295, %v1292
      %v1305 = vpack.c.bf16 %v1296, %v1293
      %v1306 = vpack.c.bf16 %v1297, %v1294
      %v1307 = vpack.c.bf16 %v1298, %v1298
      %v1308 = vpack.c.bf16 %v1299, %v1299
      %v1309 = vpack.c.bf16 %v1300, %v1300
      %v1319 = vunpack.c.l.b16 %v1301
      %v1320 = vunpack.c.l.b16 %v1302
      %v1321 = vunpack.c.l.b16 %v1303
      %v1322 = vunpack.c.h.b16 %v1301
      %v1323 = vunpack.c.h.b16 %v1302
      %v1324 = vunpack.c.h.b16 %v1303
      %v1325 = vunpack.c.l.b16 %v1304
      %v1326 = vunpack.c.l.b16 %v1305
      %v1327 = vunpack.c.l.b16 %v1306
      %v1328 = vunpack.c.h.b16 %v1304
      %v1329 = vunpack.c.h.b16 %v1305
      %v1330 = vunpack.c.h.b16 %v1306
      %v1331 = vunpack.c.l.b16 %v1307
      %v1332 = vunpack.c.l.b16 %v1308
      %v1333 = vunpack.c.l.b16 %v1309
      %v1334 = vpack.c.b16 %v1320, %v1319
      %v1335 = vpack.c.b16 %v1321, %v1321
      %v1336 = vpack.c.b16 %v1323, %v1322
      %v1337 = vpack.c.b16 %v1324, %v1324
      %v1338 = vpack.c.b16 %v1326, %v1325
      %v1339 = vpack.c.b16 %v1327, %v1327
      %v1340 = vpack.c.b16 %v1329, %v1328
      %v1341 = vpack.c.b16 %v1330, %v1330
      %v1342 = vpack.c.b16 %v1332, %v1331
      %v1343 = vpack.c.b16 %v1333, %v1333
      %1344 = vrot.lane.b32.xlu0 %v1334, 112
      %v1345 = vpop.permute.xlu0 %1344
      %1346 = vrot.lane.b32.xlu0 %v1335, 112
      %v1347 = vpop.permute.xlu0 %1346
      %1348 = vrot.lane.b32.xlu0 %v1336, 112
      %v1349 = vpop.permute.xlu0 %1348
      %1350 = vrot.lane.b32.xlu0 %v1337, 112
      %v1351 = vpop.permute.xlu0 %1350
      %1352 = vrot.lane.b32.xlu0 %v1338, 112
      %v1353 = vpop.permute.xlu0 %1352
      %1354 = vrot.lane.b32.xlu0 %v1339, 112
      %v1355 = vpop.permute.xlu0 %1354
      %1356 = vrot.lane.b32.xlu0 %v1340, 112
      %v1357 = vpop.permute.xlu0 %1356
      %1358 = vrot.lane.b32.xlu0 %v1341, 112
      %v1359 = vpop.permute.xlu0 %1358
      %1360 = vrot.lane.b32.xlu0 %v1342, 112
      %v1361 = vpop.permute.xlu0 %1360
      %1362 = vrot.lane.b32.xlu0 %v1343, 112
      %v1363 = vpop.permute.xlu0 %1362
      %v1364 = vrot.slane %v1345, 4
      %v1365 = vrot.slane %v1347, 4
      %v1366 = vrot.slane %v1349, 4
      %v1367 = vrot.slane %v1351, 4
      %v1368 = vrot.slane %v1353, 4
      %v1369 = vrot.slane %v1355, 4
      %v1370 = vrot.slane %v1357, 4
      %v1371 = vrot.slane %v1359, 4
      %v1372 = vrot.slane %v1361, 4
      %v1373 = vrot.slane %v1363, 4
      %v1374 = vsel %vm576, %v1364, %v1365
      %vm1375 = vcmask 916480
      %v1376 = vsel %vm1375, %v1345, %v1374
      %v1377 = vsel %vm576, %v1366, %v1367
      %v1378 = vsel %vm1375, %v1349, %v1377
      %v1379 = vsel %vm576, %v1368, %v1369
      %v1380 = vsel %vm1375, %v1353, %v1379
      %v1381 = vsel %vm576, %v1370, %v1371
      %v1382 = vsel %vm1375, %v1357, %v1381
      %v1383 = vsel %vm576, %v1372, %v1373
      %v1384 = vsel %vm1375, %v1361, %v1383
      %1390 = vst [vmem:[#allocation3 + $0x118] sm:$0xff] %v1376
      %1391 = vst [vmem:[#allocation3 + $0x120] sm:$0xff] %v1378
      %1392 = vst [vmem:[#allocation3 + $0x128] sm:$0xff] %v1380
      %1393 = vst [vmem:[#allocation3 + $0x130] sm:$0xff] %v1382
      %1394 = vst [vmem:[#allocation3 + $0x138] sm:$0xff] %v1384
      %v1395 = vld [vmem:[#allocation2 + $0x8] sm:$0xff]
      %v1396 = vld [vmem:[#allocation2 + $0x10] sm:$0xff]
      %v1397 = vld [vmem:[#allocation2 + $0x18] sm:$0xff]
      %v1398 = vld [vmem:[#allocation2 + $0x28] sm:$0xff]
      %v1399 = vld [vmem:[#allocation2 + $0x30] sm:$0xff]
      %v1400 = vld [vmem:[#allocation2 + $0x38] sm:$0xff]
      %v1401 = vld [vmem:[#allocation2 + $0x48] sm:$0xff]
      %v1402 = vld [vmem:[#allocation2 + $0x50] sm:$0xff]
      %v1403 = vld [vmem:[#allocation2 + $0x58] sm:$0xff]
      %v1404 = vld [vmem:[#allocation2 + $0x68] sm:$0xff]
      %v1405 = vld [vmem:[#allocation2 + $0x70] sm:$0xff]
      %v1406 = vld [vmem:[#allocation2 + $0x78] sm:$0xff]
      %v1407 = vld [vmem:[#allocation2 + $0x88] sm:$0xff]
      %v1408 = vld [vmem:[#allocation2 + $0x90] sm:$0xff]
      %v1409 = vld [vmem:[#allocation2 + $0x98] sm:$0xff]
      %1410 = vrot.lane.b32.xlu0 %v459, 17
      %v1411 = vpop.permute.xlu0 %1410
      %1412 = vrot.lane.b32.xlu0 %v463, 17
      %v1413 = vpop.permute.xlu0 %1412
      %vm1414 = vcmask 138240
      %v1415 = vsel %vm1414, %v1411, %v1413
      %v1419 = vmul.f32 %v1395, %v1411
      %v1420 = vmul.f32 %v1396, %v1415
      %v1421 = vmul.f32 %v1397, %v1413
      %v1422 = vmul.f32 %v1398, %v1411
      %v1423 = vmul.f32 %v1399, %v1415
      %v1424 = vmul.f32 %v1400, %v1413
      %v1425 = vmul.f32 %v1401, %v1411
      %v1426 = vmul.f32 %v1402, %v1415
      %v1427 = vmul.f32 %v1403, %v1413
      %v1428 = vmul.f32 %v1404, %v1411
      %v1429 = vmul.f32 %v1405, %v1415
      %v1430 = vmul.f32 %v1406, %v1413
      %v1431 = vmul.f32 %v1407, %v1411
      %v1432 = vmul.f32 %v1408, %v1415
      %v1433 = vmul.f32 %v1409, %v1413
      %v1434 = vpack.c.bf16 %v1422, %v1419
      %v1435 = vpack.c.bf16 %v1423, %v1420
      %v1436 = vpack.c.bf16 %v1424, %v1421
      %v1437 = vpack.c.bf16 %v1428, %v1425
      %v1438 = vpack.c.bf16 %v1429, %v1426
      %v1439 = vpack.c.bf16 %v1430, %v1427
      %v1440 = vpack.c.bf16 %v1431, %v1431
      %v1441 = vpack.c.bf16 %v1432, %v1432
      %v1442 = vpack.c.bf16 %v1433, %v1433
      %v1452 = vunpack.c.l.b16 %v1434
      %v1453 = vunpack.c.l.b16 %v1435
      %v1454 = vunpack.c.l.b16 %v1436
      %v1455 = vunpack.c.h.b16 %v1434
      %v1456 = vunpack.c.h.b16 %v1435
      %v1457 = vunpack.c.h.b16 %v1436
      %v1458 = vunpack.c.l.b16 %v1437
      %v1459 = vunpack.c.l.b16 %v1438
      %v1460 = vunpack.c.l.b16 %v1439
      %v1461 = vunpack.c.h.b16 %v1437
      %v1462 = vunpack.c.h.b16 %v1438
      %v1463 = vunpack.c.h.b16 %v1439
      %v1464 = vunpack.c.l.b16 %v1440
      %v1465 = vunpack.c.l.b16 %v1441
      %v1466 = vunpack.c.l.b16 %v1442
      %v1467 = vpack.c.b16 %v1453, %v1452
      %v1468 = vpack.c.b16 %v1454, %v1454
      %v1469 = vpack.c.b16 %v1456, %v1455
      %v1470 = vpack.c.b16 %v1457, %v1457
      %v1471 = vpack.c.b16 %v1459, %v1458
      %v1472 = vpack.c.b16 %v1460, %v1460
      %v1473 = vpack.c.b16 %v1462, %v1461
      %v1474 = vpack.c.b16 %v1463, %v1463
      %v1475 = vpack.c.b16 %v1465, %v1464
      %v1476 = vpack.c.b16 %v1466, %v1466
      %1477 = vrot.lane.b32.xlu0 %v1467, 111
      %v1478 = vpop.permute.xlu0 %1477
      %1479 = vrot.lane.b32.xlu0 %v1468, 111
      %v1480 = vpop.permute.xlu0 %1479
      %1481 = vrot.lane.b32.xlu0 %v1469, 111
      %v1482 = vpop.permute.xlu0 %1481
      %1483 = vrot.lane.b32.xlu0 %v1470, 111
      %v1484 = vpop.permute.xlu0 %1483
      %1485 = vrot.lane.b32.xlu0 %v1471, 111
      %v1486 = vpop.permute.xlu0 %1485
      %1487 = vrot.lane.b32.xlu0 %v1472, 111
      %v1488 = vpop.permute.xlu0 %1487
      %1489 = vrot.lane.b32.xlu0 %v1473, 111
      %v1490 = vpop.permute.xlu0 %1489
      %1491 = vrot.lane.b32.xlu0 %v1474, 111
      %v1492 = vpop.permute.xlu0 %1491
      %1493 = vrot.lane.b32.xlu0 %v1475, 111
      %v1494 = vpop.permute.xlu0 %1493
      %1495 = vrot.lane.b32.xlu0 %v1476, 111
      %v1496 = vpop.permute.xlu0 %1495
      %v1497 = vrot.slane %v1478, 4
      %v1498 = vrot.slane %v1480, 4
      %v1499 = vrot.slane %v1482, 4
      %v1500 = vrot.slane %v1484, 4
      %v1501 = vrot.slane %v1486, 4
      %v1502 = vrot.slane %v1488, 4
      %v1503 = vrot.slane %v1490, 4
      %v1504 = vrot.slane %v1492, 4
      %v1505 = vrot.slane %v1494, 4
      %v1506 = vrot.slane %v1496, 4
      %v1507 = vsel %vm576, %v1497, %v1498
      %vm1508 = vcmask 908288
      %v1509 = vsel %vm1508, %v1478, %v1507
      %v1510 = vsel %vm576, %v1499, %v1500
      %v1511 = vsel %vm1508, %v1482, %v1510
      %v1512 = vsel %vm576, %v1501, %v1502
      %v1513 = vsel %vm1508, %v1486, %v1512
      %v1514 = vsel %vm576, %v1503, %v1504
      %v1515 = vsel %vm1508, %v1490, %v1514
      %v1516 = vsel %vm576, %v1505, %v1506
      %v1517 = vsel %vm1508, %v1494, %v1516
      %1523 = vst [vmem:[#allocation3 + $0x140] sm:$0xff] %v1509
      %1524 = vst [vmem:[#allocation3 + $0x148] sm:$0xff] %v1511
      %1525 = vst [vmem:[#allocation3 + $0x150] sm:$0xff] %v1513
      %1526 = vst [vmem:[#allocation3 + $0x158] sm:$0xff] %v1515
      %1527 = vst [vmem:[#allocation3 + $0x160] sm:$0xff] %v1517
      %v1528 = vld [vmem:[%s3] sm:$0xff]
      %v1529 = vld [vmem:[%s3 + $0x8] sm:$0xf]
      %v1530 = vld [vmem:[%s3 + $0xc] sm:$0xff]
      %v1531 = vld [vmem:[%s3 + $0x14] sm:$0xf]
      %v1532 = vld [vmem:[%s3 + $0x18] sm:$0xff]
      %v1533 = vld [vmem:[%s3 + $0x20] sm:$0xf]
      %v1534 = vld [vmem:[%s3 + $0x24] sm:$0xff]
      %v1535 = vld [vmem:[%s3 + $0x2c] sm:$0xf]
      %v1536 = vld [vmem:[%s3 + $0x30] sm:$0xff]
      %v1537 = vld [vmem:[%s3 + $0x38] sm:$0xf]
      %v1538 = vld [vmem:[%s3 + $0x3c] sm:$0xff]
      %v1539 = vld [vmem:[%s3 + $0x44] sm:$0xf]
      %v1540 = vld [vmem:[%s3 + $0x48] sm:$0xff]
      %v1541 = vld [vmem:[%s3 + $0x50] sm:$0xf]
      %v1542 = vld [vmem:[%s3 + $0x54] sm:$0xff]
      %v1543 = vld [vmem:[%s3 + $0x5c] sm:$0xf]
      %v1544 = vld [vmem:[%s3 + $0x60] sm:$0xff]
      %v1545 = vld [vmem:[%s3 + $0x68] sm:$0xf]
      %v1546 = vld [vmem:[%s3 + $0x6c] sm:$0xff]
      %v1547 = vld [vmem:[%s3 + $0x74] sm:$0xf]
      %v1548 = vld [vmem:[%s3 + $0x78] sm:$0xff]
      %v1549 = vld [vmem:[%s3 + $0x80] sm:$0xf]
      %v1550 = vld [vmem:[%s3 + $0x84] sm:$0xff]
      %v1551 = vld [vmem:[%s3 + $0x8c] sm:$0xf]
      %v1552 = vld [vmem:[%s3 + $0x90] sm:$0xff]
      %v1553 = vld [vmem:[%s3 + $0x98] sm:$0xf]
      %v1554 = vld [vmem:[%s3 + $0x9c] sm:$0xff]
      %v1555 = vld [vmem:[%s3 + $0xa4] sm:$0xf]
      %v1556 = vld [vmem:[%s3 + $0xa8] sm:$0xff]
      %v1557 = vld [vmem:[%s3 + $0xb0] sm:$0xf]
      %v1558 = vld [vmem:[%s3 + $0xb4] sm:$0xff]
      %v1559 = vld [vmem:[%s3 + $0xbc] sm:$0xf]
      %v1560 = vld [vmem:[#allocation3] sm:$0xff]
      %v1561 = vld [vmem:[#allocation3 + $0x8] sm:$0xff]
      %v1562 = vld [vmem:[#allocation3 + $0x10] sm:$0xff]
      %v1563 = vld [vmem:[#allocation3 + $0x18] sm:$0xff]
      %v1564 = vld [vmem:[#allocation3 + $0x20] sm:$0xff]
      %v1565 = vld [vmem:[#allocation3 + $0x28] sm:$0xff]
      %v1566 = vld [vmem:[#allocation3 + $0x30] sm:$0xff]
      %v1567 = vld [vmem:[#allocation3 + $0x38] sm:$0xff]
      %v1568 = vld [vmem:[#allocation3 + $0x40] sm:$0xff]
      %v1569 = vld [vmem:[#allocation3 + $0x48] sm:$0xff]
      %v1570 = vld [vmem:[#allocation3 + $0x50] sm:$0xff]
      %v1571 = vld [vmem:[#allocation3 + $0x58] sm:$0xff]
      %v1572 = vld [vmem:[#allocation3 + $0x60] sm:$0xff]
      %v1573 = vld [vmem:[#allocation3 + $0x68] sm:$0xff]
      %v1574 = vld [vmem:[#allocation3 + $0x70] sm:$0xff]
      %v1575 = vld [vmem:[#allocation3 + $0x78] sm:$0xff]
      %v1576 = vld [vmem:[#allocation3 + $0x80] sm:$0xff]
      %v1577 = vld [vmem:[#allocation3 + $0x88] sm:$0xff]
      %v1578 = vld [vmem:[#allocation3 + $0x90] sm:$0xff]
      %v1579 = vld [vmem:[#allocation3 + $0x98] sm:$0xff]
      %v1580 = vld [vmem:[#allocation3 + $0xa0] sm:$0xff]
      %v1581 = vld [vmem:[#allocation3 + $0xa8] sm:$0xff]
      %v1582 = vld [vmem:[#allocation3 + $0xb0] sm:$0xff]
      %v1583 = vld [vmem:[#allocation3 + $0xb8] sm:$0xff]
      %v1584 = vld [vmem:[#allocation3 + $0xc0] sm:$0xff]
      %v1585 = vld [vmem:[#allocation3 + $0xc8] sm:$0xff]
      %v1586 = vld [vmem:[#allocation3 + $0xd0] sm:$0xff]
      %v1587 = vld [vmem:[#allocation3 + $0xd8] sm:$0xff]
      %v1588 = vld [vmem:[#allocation3 + $0xe0] sm:$0xff]
      %v1589 = vld [vmem:[#allocation3 + $0xe8] sm:$0xff]
      %v1590 = vld [vmem:[#allocation3 + $0xf0] sm:$0xff]
      %v1591 = vld [vmem:[#allocation3 + $0xf8] sm:$0xff]
      %v1592 = vld [vmem:[#allocation3 + $0x100] sm:$0xff]
      %v1593 = vld [vmem:[#allocation3 + $0x108] sm:$0xff]
      %v1594 = vld [vmem:[#allocation3 + $0x110] sm:$0xff]
      %v1595 = vld [vmem:[#allocation3 + $0x118] sm:$0xff]
      %v1596 = vld [vmem:[#allocation3 + $0x120] sm:$0xff]
      %v1597 = vld [vmem:[#allocation3 + $0x128] sm:$0xff]
      %v1598 = vld [vmem:[#allocation3 + $0x130] sm:$0xff]
      %v1599 = vld [vmem:[#allocation3 + $0x138] sm:$0xff]
      %v1600 = vld [vmem:[#allocation3 + $0x140] sm:$0xff]
      %v1601 = vld [vmem:[#allocation3 + $0x148] sm:$0xff]
      %v1602 = vld [vmem:[#allocation3 + $0x150] sm:$0xff]
      %v1603 = vld [vmem:[#allocation3 + $0x158] sm:$0xff]
      %v1604 = vld [vmem:[#allocation3 + $0x160] sm:$0xff]
      %v1605 = vld [vmem:[%s4] sm:$0xff]
      %v1606 = vld [vmem:[%s4 + $0x8] sm:$0xff]
      %v1607 = vld [vmem:[%s4 + $0x10] sm:$0xff]
      %v1608 = vld [vmem:[%s4 + $0x18] sm:$0xff]
      %v1609 = vld [vmem:[%s4 + $0x20] sm:$0xff]
      %v1610 = vld [vmem:[%s4 + $0x28] sm:$0xff]
      %v1611 = vld [vmem:[%s4 + $0x30] sm:$0xff]
      %v1612 = vld [vmem:[%s4 + $0x38] sm:$0xff]
      %v1613 = vld [vmem:[%s4 + $0x40] sm:$0xff]
      %v1614 = vld [vmem:[%s4 + $0x48] sm:$0xff]
      %v1615 = vld [vmem:[%s4 + $0x50] sm:$0xff]
      %v1616 = vld [vmem:[%s4 + $0x58] sm:$0xff]
      %v1617 = vld [vmem:[%s4 + $0x60] sm:$0xff]
      %v1618 = vld [vmem:[%s4 + $0x68] sm:$0xff]
      %v1619 = vld [vmem:[%s4 + $0x70] sm:$0xff]
      %v1620 = vld [vmem:[%s4 + $0x78] sm:$0xff]
      %1622 = vset.pattern.permute.xlu0 0
      %1623 = vperm.xlu0 %1622, %v1605
      %v1624 = vpop.permute.xlu0 %1623
      %1627 = vset.pattern.permute.xlu0 0
      %1628 = vperm.xlu0 %1627, %v1606
      %v1629 = vpop.permute.xlu0 %1628
      %1632 = vset.pattern.permute.xlu0 0
      %1633 = vperm.xlu0 %1632, %v1607
      %v1634 = vpop.permute.xlu0 %1633
      %1637 = vset.pattern.permute.xlu0 0
      %1638 = vperm.xlu0 %1637, %v1608
      %v1639 = vpop.permute.xlu0 %1638
      %1642 = vset.pattern.permute.xlu0 0
      %1643 = vperm.xlu0 %1642, %v1609
      %v1644 = vpop.permute.xlu0 %1643
      %1647 = vset.pattern.permute.xlu0 0
      %1648 = vperm.xlu0 %1647, %v1610
      %v1649 = vpop.permute.xlu0 %1648
      %1652 = vset.pattern.permute.xlu0 0
      %1653 = vperm.xlu0 %1652, %v1611
      %v1654 = vpop.permute.xlu0 %1653
      %1657 = vset.pattern.permute.xlu0 0
      %1658 = vperm.xlu0 %1657, %v1612
      %v1659 = vpop.permute.xlu0 %1658
      %1662 = vset.pattern.permute.xlu0 0
      %1663 = vperm.xlu0 %1662, %v1613
      %v1664 = vpop.permute.xlu0 %1663
      %1667 = vset.pattern.permute.xlu0 0
      %1668 = vperm.xlu0 %1667, %v1614
      %v1669 = vpop.permute.xlu0 %1668
      %1672 = vset.pattern.permute.xlu0 0
      %1673 = vperm.xlu0 %1672, %v1615
      %v1674 = vpop.permute.xlu0 %1673
      %1677 = vset.pattern.permute.xlu0 0
      %1678 = vperm.xlu0 %1677, %v1616
      %v1679 = vpop.permute.xlu0 %1678
      %1682 = vset.pattern.permute.xlu0 0
      %1683 = vperm.xlu0 %1682, %v1617
      %v1684 = vpop.permute.xlu0 %1683
      %1687 = vset.pattern.permute.xlu0 0
      %1688 = vperm.xlu0 %1687, %v1618
      %v1689 = vpop.permute.xlu0 %1688
      %1692 = vset.pattern.permute.xlu0 0
      %1693 = vperm.xlu0 %1692, %v1619
      %v1694 = vpop.permute.xlu0 %1693
      %1697 = vset.pattern.permute.xlu0 0
      %1698 = vperm.xlu0 %1697, %v1620
      %v1699 = vpop.permute.xlu0 %1698
      %v1733 = vunpack.c.l.b16 %v1528
      %v1734 = vunpack.c.h.b16 %v1528
      %v1735 = vunpack.c.l.b16 %v1529
      %v1736 = vunpack.c.l.b16 %v1530
      %v1737 = vunpack.c.h.b16 %v1530
      %v1738 = vunpack.c.l.b16 %v1531
      %v1739 = vunpack.c.l.b16 %v1532
      %v1740 = vunpack.c.h.b16 %v1532
      %v1741 = vunpack.c.l.b16 %v1533
      %v1742 = vunpack.c.l.b16 %v1534
      %v1743 = vunpack.c.h.b16 %v1534
      %v1744 = vunpack.c.l.b16 %v1535
      %v1745 = vunpack.c.l.b16 %v1536
      %v1746 = vunpack.c.h.b16 %v1536
      %v1747 = vunpack.c.l.b16 %v1537
      %v1748 = vunpack.c.l.b16 %v1538
      %v1749 = vunpack.c.h.b16 %v1538
      %v1750 = vunpack.c.l.b16 %v1539
      %v1751 = vunpack.c.l.b16 %v1540
      %v1752 = vunpack.c.h.b16 %v1540
      %v1753 = vunpack.c.l.b16 %v1541
      %v1754 = vunpack.c.l.b16 %v1542
      %v1755 = vunpack.c.h.b16 %v1542
      %v1756 = vunpack.c.l.b16 %v1543
      %v1757 = vunpack.c.l.b16 %v1544
      %v1758 = vunpack.c.h.b16 %v1544
      %v1759 = vunpack.c.l.b16 %v1545
      %v1760 = vunpack.c.l.b16 %v1546
      %v1761 = vunpack.c.h.b16 %v1546
      %v1762 = vunpack.c.l.b16 %v1547
      %v1763 = vunpack.c.l.b16 %v1548
      %v1764 = vunpack.c.h.b16 %v1548
      %v1765 = vunpack.c.l.b16 %v1549
      %v1766 = vunpack.c.l.b16 %v1550
      %v1767 = vunpack.c.h.b16 %v1550
      %v1768 = vunpack.c.l.b16 %v1551
      %v1769 = vunpack.c.l.b16 %v1552
      %v1770 = vunpack.c.h.b16 %v1552
      %v1771 = vunpack.c.l.b16 %v1553
      %v1772 = vunpack.c.l.b16 %v1554
      %v1773 = vunpack.c.h.b16 %v1554
      %v1774 = vunpack.c.l.b16 %v1555
      %v1775 = vunpack.c.l.b16 %v1556
      %v1776 = vunpack.c.h.b16 %v1556
      %v1777 = vunpack.c.l.b16 %v1557
      %v1778 = vunpack.c.l.b16 %v1558
      %v1779 = vunpack.c.h.b16 %v1558
      %v1780 = vunpack.c.l.b16 %v1559
      %v1781 = vpack.c.b16 %v1736, %v1733
      %v1782 = vpack.c.b16 %v1737, %v1734
      %v1783 = vpack.c.b16 %v1738, %v1735
      %v1784 = vpack.c.b16 %v1742, %v1739
      %v1785 = vpack.c.b16 %v1743, %v1740
      %v1786 = vpack.c.b16 %v1744, %v1741
      %v1787 = vpack.c.b16 %v1748, %v1745
      %v1788 = vpack.c.b16 %v1749, %v1746
      %v1789 = vpack.c.b16 %v1750, %v1747
      %v1790 = vpack.c.b16 %v1754, %v1751
      %v1791 = vpack.c.b16 %v1755, %v1752
      %v1792 = vpack.c.b16 %v1756, %v1753
      %v1793 = vpack.c.b16 %v1760, %v1757
      %v1794 = vpack.c.b16 %v1761, %v1758
      %v1795 = vpack.c.b16 %v1762, %v1759
      %v1796 = vpack.c.b16 %v1766, %v1763
      %v1797 = vpack.c.b16 %v1767, %v1764
      %v1798 = vpack.c.b16 %v1768, %v1765
      %v1799 = vpack.c.b16 %v1772, %v1769
      %v1800 = vpack.c.b16 %v1773, %v1770
      %v1801 = vpack.c.b16 %v1774, %v1771
      %v1802 = vpack.c.b16 %v1778, %v1775
      %v1803 = vpack.c.b16 %v1779, %v1776
      %v1804 = vpack.c.b16 %v1780, %v1777
      %v1866 = vunpack.c.l.b16 %v1560
      %v1867 = vunpack.c.h.b16 %v1560
      %v1868 = vunpack.c.l.b16 %v1561
      %v1869 = vunpack.c.h.b16 %v1561
      %v1870 = vunpack.c.l.b16 %v1562
      %v1871 = vunpack.c.h.b16 %v1562
      %v1872 = vunpack.c.l.b16 %v1563
      %v1873 = vunpack.c.h.b16 %v1563
      %v1874 = vunpack.c.l.b16 %v1564
      %v1875 = vunpack.c.h.b16 %v1564
      %v1876 = vunpack.c.l.b16 %v1565
      %v1877 = vunpack.c.h.b16 %v1565
      %v1878 = vunpack.c.l.b16 %v1566
      %v1879 = vunpack.c.h.b16 %v1566
      %v1880 = vunpack.c.l.b16 %v1567
      %v1881 = vunpack.c.h.b16 %v1567
      %v1882 = vunpack.c.l.b16 %v1568
      %v1883 = vunpack.c.h.b16 %v1568
      %v1884 = vunpack.c.l.b16 %v1569
      %v1885 = vunpack.c.h.b16 %v1569
      %v1886 = vunpack.c.l.b16 %v1570
      %v1887 = vunpack.c.h.b16 %v1570
      %v1888 = vunpack.c.l.b16 %v1571
      %v1889 = vunpack.c.h.b16 %v1571
      %v1890 = vunpack.c.l.b16 %v1572
      %v1891 = vunpack.c.h.b16 %v1572
      %v1892 = vunpack.c.l.b16 %v1573
      %v1893 = vunpack.c.h.b16 %v1573
      %v1894 = vunpack.c.l.b16 %v1574
      %v1895 = vunpack.c.h.b16 %v1574
      %v1896 = vunpack.c.l.b16 %v1575
      %v1897 = vunpack.c.h.b16 %v1575
      %v1898 = vunpack.c.l.b16 %v1576
      %v1899 = vunpack.c.h.b16 %v1576
      %v1900 = vunpack.c.l.b16 %v1577
      %v1901 = vunpack.c.h.b16 %v1577
      %v1902 = vunpack.c.l.b16 %v1578
      %v1903 = vunpack.c.h.b16 %v1578
      %v1904 = vunpack.c.l.b16 %v1579
      %v1905 = vunpack.c.h.b16 %v1579
      %v1906 = vunpack.c.l.b16 %v1580
      %v1907 = vunpack.c.h.b16 %v1580
      %v1908 = vunpack.c.l.b16 %v1581
      %v1909 = vunpack.c.h.b16 %v1581
      %v1910 = vunpack.c.l.b16 %v1582
      %v1911 = vunpack.c.h.b16 %v1582
      %v1912 = vunpack.c.l.b16 %v1583
      %v1913 = vunpack.c.h.b16 %v1583
      %v1914 = vunpack.c.l.b16 %v1584
      %v1915 = vunpack.c.h.b16 %v1584
      %v1916 = vunpack.c.l.b16 %v1585
      %v1917 = vunpack.c.h.b16 %v1585
      %v1918 = vunpack.c.l.b16 %v1586
      %v1919 = vunpack.c.h.b16 %v1586
      %v1920 = vunpack.c.l.b16 %v1587
      %v1921 = vunpack.c.h.b16 %v1587
      %v1922 = vunpack.c.l.b16 %v1588
      %v1923 = vunpack.c.h.b16 %v1588
      %v1924 = vunpack.c.l.b16 %v1589
      %v1925 = vunpack.c.h.b16 %v1589
      %v1926 = vunpack.c.l.b16 %v1590
      %v1927 = vunpack.c.h.b16 %v1590
      %v1928 = vunpack.c.l.b16 %v1591
      %v1929 = vunpack.c.h.b16 %v1591
      %v1930 = vunpack.c.l.b16 %v1592
      %v1931 = vunpack.c.h.b16 %v1592
      %v1932 = vunpack.c.l.b16 %v1593
      %v1933 = vunpack.c.h.b16 %v1593
      %v1934 = vunpack.c.l.b16 %v1594
      %v1935 = vunpack.c.h.b16 %v1594
      %v1936 = vunpack.c.l.b16 %v1595
      %v1937 = vunpack.c.h.b16 %v1595
      %v1938 = vunpack.c.l.b16 %v1596
      %v1939 = vunpack.c.h.b16 %v1596
      %v1940 = vunpack.c.l.b16 %v1597
      %v1941 = vunpack.c.h.b16 %v1597
      %v1942 = vunpack.c.l.b16 %v1598
      %v1943 = vunpack.c.h.b16 %v1598
      %v1944 = vunpack.c.l.b16 %v1599
      %v1945 = vunpack.c.h.b16 %v1599
      %v1946 = vunpack.c.l.b16 %v1600
      %v1947 = vunpack.c.h.b16 %v1600
      %v1948 = vunpack.c.l.b16 %v1601
      %v1949 = vunpack.c.h.b16 %v1601
      %v1950 = vunpack.c.l.b16 %v1602
      %v1951 = vunpack.c.h.b16 %v1602
      %v1952 = vunpack.c.l.b16 %v1603
      %v1953 = vunpack.c.h.b16 %v1603
      %v1954 = vunpack.c.l.b16 %v1604
      %v1955 = vunpack.c.h.b16 %v1604
      %v1956 = vpack.c.b16 %v1868, %v1866
      %v1957 = vpack.c.b16 %v1869, %v1867
      %v1958 = vpack.c.b16 %v1872, %v1870
      %v1959 = vpack.c.b16 %v1873, %v1871
      %v1960 = vpack.c.b16 %v1876, %v1874
      %v1961 = vpack.c.b16 %v1877, %v1875
      %v1962 = vpack.c.b16 %v1880, %v1878
      %v1963 = vpack.c.b16 %v1881, %v1879
      %v1964 = vpack.c.b16 %v1884, %v1882
      %v1965 = vpack.c.b16 %v1885, %v1883
      %v1966 = vpack.c.b16 %v1888, %v1886
      %v1967 = vpack.c.b16 %v1889, %v1887
      %v1968 = vpack.c.b16 %v1892, %v1890
      %v1969 = vpack.c.b16 %v1893, %v1891
      %v1970 = vpack.c.b16 %v1896, %v1894
      %v1971 = vpack.c.b16 %v1897, %v1895
      %v1972 = vpack.c.b16 %v1900, %v1898
      %v1973 = vpack.c.b16 %v1901, %v1899
      %v1974 = vpack.c.b16 %v1904, %v1902
      %v1975 = vpack.c.b16 %v1905, %v1903
      %v1976 = vpack.c.b16 %v1908, %v1906
      %v1977 = vpack.c.b16 %v1909, %v1907
      %v1978 = vpack.c.b16 %v1912, %v1910
      %v1979 = vpack.c.b16 %v1913, %v1911
      %v1980 = vpack.c.b16 %v1916, %v1914
      %v1981 = vpack.c.b16 %v1917, %v1915
      %v1982 = vpack.c.b16 %v1920, %v1918
      %v1983 = vpack.c.b16 %v1921, %v1919
      %v1984 = vpack.c.b16 %v1924, %v1922
      %v1985 = vpack.c.b16 %v1925, %v1923
      %v1986 = vpack.c.b16 %v1928, %v1926
      %v1987 = vpack.c.b16 %v1929, %v1927
      %v1988 = vpack.c.b16 %v1932, %v1930
      %v1989 = vpack.c.b16 %v1933, %v1931
      %v1990 = vpack.c.b16 %v1936, %v1934
      %v1991 = vpack.c.b16 %v1937, %v1935
      %v1992 = vpack.c.b16 %v1940, %v1938
      %v1993 = vpack.c.b16 %v1941, %v1939
      %v1994 = vpack.c.b16 %v1944, %v1942
      %v1995 = vpack.c.b16 %v1945, %v1943
      %v1996 = vpack.c.b16 %v1948, %v1946
      %v1997 = vpack.c.b16 %v1949, %v1947
      %v1998 = vpack.c.b16 %v1952, %v1950
      %v1999 = vpack.c.b16 %v1953, %v1951
      %v2000 = vpack.c.b16 %v1954, %v1954
      %v2001 = vpack.c.b16 %v1955, %v1955
      %vm2046 = vcmask 850944
      %v2048 = vsel %vm2046, %v1783, 0
      %v2051 = vsel %vm2046, %v1786, 0
      %v2054 = vsel %vm2046, %v1789, 0
      %v2057 = vsel %vm2046, %v1792, 0
      %v2060 = vsel %vm2046, %v1795, 0
      %v2063 = vsel %vm2046, %v1798, 0
      %v2066 = vsel %vm2046, %v1801, 0
      %v2069 = vsel %vm2046, %v1804, 0
      %vm2071 = vcmask 1043456
      %v2073 = vsel %vm2071, %v2000, 0
      %v2076 = vsel %vm2071, %v2001, 0
      %2078 = vmatprep.subr.bf16.mxu0 %v1971
      %2079 = vmatpush1.bf16.msra.mxu0 %v1970
      %2080 = vmatprep.subr.bf16.mxu0 %v1969
      %2081 = vmatpush1.bf16.msra.mxu0 %v1968
      %2082 = vmatprep.subr.bf16.mxu0 %v1967
      %2083 = vmatpush1.bf16.msra.mxu0 %v1966
      %2084 = vmatprep.subr.bf16.mxu0 %v1965
      %2085 = vmatpush1.bf16.msra.mxu0 %v1964
      %2086 = vmatprep.subr.bf16.mxu0 %v1963
      %2087 = vmatpush1.bf16.msra.mxu0 %v1962
      %2088 = vmatprep.subr.bf16.mxu0 %v1961
      %2089 = vmatpush1.bf16.msra.mxu0 %v1960
      %2090 = vmatprep.subr.bf16.mxu0 %v1959
      %2091 = vmatpush1.bf16.msra.mxu0 %v1958
      %2092 = vmatprep.subr.bf16.mxu0 %v1957
      %2093 = vmatpush1.bf16.msra.mxu0 %v1956
      %2094 = vmatprep.subr.bf16.mxu0 %v1987
      %2095 = vmatpush2.bf16.msra.mxu0 %v1986
      %2096 = vmatprep.subr.bf16.mxu0 %v1985
      %2097 = vmatpush2.bf16.msra.mxu0 %v1984
      %2098 = vmatprep.subr.bf16.mxu0 %v1983
      %2099 = vmatpush2.bf16.msra.mxu0 %v1982
      %2100 = vmatprep.subr.bf16.mxu0 %v1981
      %2101 = vmatpush2.bf16.msra.mxu0 %v1980
      %2102 = vmatprep.subr.bf16.mxu0 %v1979
      %2103 = vmatpush2.bf16.msra.mxu0 %v1978
      %2104 = vmatprep.subr.bf16.mxu0 %v1977
      %2105 = vmatpush2.bf16.msra.mxu0 %v1976
      %2106 = vmatprep.subr.bf16.mxu0 %v1975
      %2107 = vmatpush2.bf16.msra.mxu0 %v1974
      %2108 = vmatprep.subr.bf16.mxu0 %v1973
      %2109 = vmatpush2.bf16.msra.mxu0 %v1972
      %2110 = vmatprep.mubr.bf16.mxu0 %v1782
      %2111 = vmatmul.mubr.bf16.gmra.mxu0 %v1781
      %v2112 = vpop.f32.mrf.mxu0
      %v2113 = vadd.f32 %v1624, %v2112
      %v2114 = vpop.f32.mrf.mxu0
      %v2115 = vadd.f32 %v1624, %v2114
      %v2116 = vpop.f32.mrf.mxu0
      %v2117 = vadd.f32 %v1629, %v2116
      %v2118 = vpop.f32.mrf.mxu0
      %v2119 = vadd.f32 %v1629, %v2118
      %2120 = vmatprep.mubr.bf16.mxu0 %v1785
      %2121 = vmatmul.mubr.bf16.gmra.mxu0 %v1784
      %v2122 = vpop.f32.mrf.mxu0
      %v2123 = vadd.f32 %v1634, %v2122
      %v2124 = vpop.f32.mrf.mxu0
      %v2125 = vadd.f32 %v1634, %v2124
      %v2126 = vpop.f32.mrf.mxu0
      %v2127 = vadd.f32 %v1639, %v2126
      %v2128 = vpop.f32.mrf.mxu0
      %v2129 = vadd.f32 %v1639, %v2128
      %2130 = vmatprep.mubr.bf16.mxu0 %v1788
      %2131 = vmatmul.mubr.bf16.gmra.mxu0 %v1787
      %v2132 = vpop.f32.mrf.mxu0
      %v2133 = vadd.f32 %v1644, %v2132
      %v2134 = vpop.f32.mrf.mxu0
      %v2135 = vadd.f32 %v1644, %v2134
      %v2136 = vpop.f32.mrf.mxu0
      %v2137 = vadd.f32 %v1649, %v2136
      %v2138 = vpop.f32.mrf.mxu0
      %v2139 = vadd.f32 %v1649, %v2138
      %2140 = vmatprep.mubr.bf16.mxu0 %v1791
      %2141 = vmatmul.mubr.bf16.gmra.mxu0 %v1790
      %v2142 = vpop.f32.mrf.mxu0
      %v2143 = vadd.f32 %v1654, %v2142
      %v2144 = vpop.f32.mrf.mxu0
      %v2145 = vadd.f32 %v1654, %v2144
      %v2146 = vpop.f32.mrf.mxu0
      %v2147 = vadd.f32 %v1659, %v2146
      %v2148 = vpop.f32.mrf.mxu0
      %v2149 = vadd.f32 %v1659, %v2148
      %2150 = vmatprep.mubr.bf16.mxu0 %v1794
      %2151 = vmatmul.mubr.bf16.gmra.mxu0 %v1793
      %v2152 = vpop.f32.mrf.mxu0
      %v2153 = vadd.f32 %v1664, %v2152
      %v2154 = vpop.f32.mrf.mxu0
      %v2155 = vadd.f32 %v1664, %v2154
      %v2156 = vpop.f32.mrf.mxu0
      %v2157 = vadd.f32 %v1669, %v2156
      %v2158 = vpop.f32.mrf.mxu0
      %v2159 = vadd.f32 %v1669, %v2158
      %2160 = vmatprep.mubr.bf16.mxu0 %v1797
      %2161 = vmatmul.mubr.bf16.gmra.mxu0 %v1796
      %v2162 = vpop.f32.mrf.mxu0
      %v2163 = vadd.f32 %v1674, %v2162
      %v2164 = vpop.f32.mrf.mxu0
      %v2165 = vadd.f32 %v1674, %v2164
      %v2166 = vpop.f32.mrf.mxu0
      %v2167 = vadd.f32 %v1679, %v2166
      %v2168 = vpop.f32.mrf.mxu0
      %v2169 = vadd.f32 %v1679, %v2168
      %2170 = vmatprep.mubr.bf16.mxu0 %v1800
      %2171 = vmatmul.mubr.bf16.gmra.mxu0 %v1799
      %v2172 = vpop.f32.mrf.mxu0
      %v2173 = vadd.f32 %v1684, %v2172
      %v2174 = vpop.f32.mrf.mxu0
      %v2175 = vadd.f32 %v1684, %v2174
      %v2176 = vpop.f32.mrf.mxu0
      %v2177 = vadd.f32 %v1689, %v2176
      %v2178 = vpop.f32.mrf.mxu0
      %v2179 = vadd.f32 %v1689, %v2178
      %2180 = vmatprep.mubr.bf16.mxu0 %v1803
      %2181 = vmatmul.mubr.bf16.gmra.mxu0 %v1802
      %v2182 = vpop.f32.mrf.mxu0
      %v2183 = vadd.f32 %v1694, %v2182
      %v2184 = vpop.f32.mrf.mxu0
      %v2185 = vadd.f32 %v1694, %v2184
      %v2186 = vpop.f32.mrf.mxu0
      %v2187 = vadd.f32 %v1699, %v2186
      %v2188 = vpop.f32.mrf.mxu0
      %v2189 = vadd.f32 %v1699, %v2188
      %2190 = vdwg.mxu0
      %2191 = vmatprep.subr.bf16.mxu0 0
      %2192 = vmatpush1.bf16.msra.mxu0 0
      %2193 = vmatprep.subr.bf16.mxu0 %v2076
      %2194 = vmatpush1.bf16.msra.mxu0 %v2073
      %2195 = vmatprep.subr.bf16.mxu0 %v1999
      %2196 = vmatpush1.bf16.msra.mxu0 %v1998
      %2197 = vmatprep.subr.bf16.mxu0 %v1997
      %2198 = vmatpush1.bf16.msra.mxu0 %v1996
      %2199 = vmatprep.subr.bf16.mxu0 %v1995
      %2200 = vmatpush1.bf16.msra.mxu0 %v1994
      %2201 = vmatprep.subr.bf16.mxu0 %v1993
      %2202 = vmatpush1.bf16.msra.mxu0 %v1992
      %2203 = vmatprep.subr.bf16.mxu0 %v1991
      %2204 = vmatpush1.bf16.msra.mxu0 %v1990
      %2205 = vmatprep.subr.bf16.mxu0 %v1989
      %2206 = vmatpush1.bf16.msra.mxu0 %v1988
      %2207 = vmatprep.subr.bf16.mxu0 0
      %2208 = vmatpush2.bf16.msra.mxu0 0
      %2209 = vmatprep.subr.bf16.mxu0 0
      %2210 = vmatpush2.bf16.msra.mxu0 0
      %2211 = vmatprep.subr.bf16.mxu0 0
      %2212 = vmatpush2.bf16.msra.mxu0 0
      %2213 = vmatprep.subr.bf16.mxu0 0
      %2214 = vmatpush2.bf16.msra.mxu0 0
      %2215 = vmatprep.subr.bf16.mxu0 0
      %2216 = vmatpush2.bf16.msra.mxu0 0
      %2217 = vmatprep.subr.bf16.mxu0 0
      %2218 = vmatpush2.bf16.msra.mxu0 0
      %2219 = vmatprep.subr.bf16.mxu0 0
      %2220 = vmatpush2.bf16.msra.mxu0 0
      %2221 = vmatprep.subr.bf16.mxu0 0
      %2222 = vmatpush2.bf16.msra.mxu0 0
      %2223 = vmatprep.mubr.bf16.mxu0 0
      %2224 = vmatmul.mubr.bf16.gmra.mxu0 %v2048
      %v2225 = vpop.f32.mrf.mxu0
      %v2226 = vadd.f32 %v2113, %v2225
      %v2227 = vpop.f32.mrf.mxu0
      %v2228 = vadd.f32 %v2115, %v2227
      %v2229 = vpop.f32.mrf.mxu0
      %v2230 = vadd.f32 %v2117, %v2229
      %v2231 = vpop.f32.mrf.mxu0
      %v2232 = vadd.f32 %v2119, %v2231
      %2233 = vmatprep.mubr.bf16.mxu0 0
      %2234 = vmatmul.mubr.bf16.gmra.mxu0 %v2051
      %v2235 = vpop.f32.mrf.mxu0
      %v2236 = vadd.f32 %v2123, %v2235
      %v2237 = vpop.f32.mrf.mxu0
      %v2238 = vadd.f32 %v2125, %v2237
      %v2239 = vpop.f32.mrf.mxu0
      %v2240 = vadd.f32 %v2127, %v2239
      %v2241 = vpop.f32.mrf.mxu0
      %v2242 = vadd.f32 %v2129, %v2241
      %2243 = vmatprep.mubr.bf16.mxu0 0
      %2244 = vmatmul.mubr.bf16.gmra.mxu0 %v2054
      %v2245 = vpop.f32.mrf.mxu0
      %v2246 = vadd.f32 %v2133, %v2245
      %v2247 = vpop.f32.mrf.mxu0
      %v2248 = vadd.f32 %v2135, %v2247
      %v2249 = vpop.f32.mrf.mxu0
      %v2250 = vadd.f32 %v2137, %v2249
      %v2251 = vpop.f32.mrf.mxu0
      %v2252 = vadd.f32 %v2139, %v2251
      %2253 = vmatprep.mubr.bf16.mxu0 0
      %2254 = vmatmul.mubr.bf16.gmra.mxu0 %v2057
      %v2255 = vpop.f32.mrf.mxu0
      %v2256 = vadd.f32 %v2143, %v2255
      %v2257 = vpop.f32.mrf.mxu0
      %v2258 = vadd.f32 %v2145, %v2257
      %v2259 = vpop.f32.mrf.mxu0
      %v2260 = vadd.f32 %v2147, %v2259
      %v2261 = vpop.f32.mrf.mxu0
      %v2262 = vadd.f32 %v2149, %v2261
      %2263 = vmatprep.mubr.bf16.mxu0 0
      %2264 = vmatmul.mubr.bf16.gmra.mxu0 %v2060
      %v2265 = vpop.f32.mrf.mxu0
      %v2266 = vadd.f32 %v2153, %v2265
      %v2267 = vpop.f32.mrf.mxu0
      %v2268 = vadd.f32 %v2155, %v2267
      %v2269 = vpop.f32.mrf.mxu0
      %v2270 = vadd.f32 %v2157, %v2269
      %v2271 = vpop.f32.mrf.mxu0
      %v2272 = vadd.f32 %v2159, %v2271
      %2273 = vmatprep.mubr.bf16.mxu0 0
      %2274 = vmatmul.mubr.bf16.gmra.mxu0 %v2063
      %v2275 = vpop.f32.mrf.mxu0
      %v2276 = vadd.f32 %v2163, %v2275
      %v2277 = vpop.f32.mrf.mxu0
      %v2278 = vadd.f32 %v2165, %v2277
      %v2279 = vpop.f32.mrf.mxu0
      %v2280 = vadd.f32 %v2167, %v2279
      %v2281 = vpop.f32.mrf.mxu0
      %v2282 = vadd.f32 %v2169, %v2281
      %2283 = vmatprep.mubr.bf16.mxu0 0
      %2284 = vmatmul.mubr.bf16.gmra.mxu0 %v2066
      %v2285 = vpop.f32.mrf.mxu0
      %v2286 = vadd.f32 %v2173, %v2285
      %v2287 = vpop.f32.mrf.mxu0
      %v2288 = vadd.f32 %v2175, %v2287
      %v2289 = vpop.f32.mrf.mxu0
      %v2290 = vadd.f32 %v2177, %v2289
      %v2291 = vpop.f32.mrf.mxu0
      %v2292 = vadd.f32 %v2179, %v2291
      %2293 = vmatprep.mubr.bf16.mxu0 0
      %2294 = vmatmul.mubr.bf16.gmra.mxu0 %v2069
      %v2295 = vpop.f32.mrf.mxu0
      %v2296 = vadd.f32 %v2183, %v2295
      %v2297 = vpop.f32.mrf.mxu0
      %v2298 = vadd.f32 %v2185, %v2297
      %v2299 = vpop.f32.mrf.mxu0
      %v2300 = vadd.f32 %v2187, %v2299
      %v2301 = vpop.f32.mrf.mxu0
      %v2302 = vadd.f32 %v2189, %v2301
      %2303 = vdwg.mxu0
      %v2304 = vxor.u32 %v2226, 2147483648
      %v2305 = vxor.u32 %v2228, 2147483648
      %v2306 = vxor.u32 %v2230, 2147483648
      %v2307 = vxor.u32 %v2232, 2147483648
      %v2308 = vxor.u32 %v2236, 2147483648
      %v2309 = vxor.u32 %v2238, 2147483648
      %v2310 = vxor.u32 %v2240, 2147483648
      %v2311 = vxor.u32 %v2242, 2147483648
      %v2312 = vmul.f32 %v2304, 1.442695
      %v2313 = vpow.pop %v2312
      %v2314 = vmul.f32 %v2305, 1.442695
      %v2315 = vpow.pop %v2314
      %v2316 = vmul.f32 %v2306, 1.442695
      %v2317 = vpow.pop %v2316
      %v2318 = vmul.f32 %v2307, 1.442695
      %v2319 = vpow.pop %v2318
      %v2320 = vmul.f32 %v2308, 1.442695
      %v2321 = vpow.pop %v2320
      %v2322 = vmul.f32 %v2309, 1.442695
      %v2323 = vpow.pop %v2322
      %v2324 = vmul.f32 %v2310, 1.442695
      %v2325 = vpow.pop %v2324
      %v2326 = vmul.f32 %v2311, 1.442695
      %v2327 = vpow.pop %v2326
      %v2328 = vadd.f32 %v2313, 1.0
      %v2329 = vadd.f32 %v2315, 1.0
      %v2330 = vadd.f32 %v2317, 1.0
      %v2331 = vadd.f32 %v2319, 1.0
      %v2332 = vadd.f32 %v2321, 1.0
      %v2333 = vadd.f32 %v2323, 1.0
      %v2334 = vadd.f32 %v2325, 1.0
      %v2335 = vadd.f32 %v2327, 1.0
      %v2336 = vrcp.pop %v2328
      %v2337 = vmul.f32 1.0, %v2336
      %v2338 = vrcp.pop %v2329
      %v2339 = vmul.f32 1.0, %v2338
      %v2340 = vrcp.pop %v2330
      %v2341 = vmul.f32 1.0, %v2340
      %v2342 = vrcp.pop %v2331
      %v2343 = vmul.f32 1.0, %v2342
      %v2344 = vrcp.pop %v2332
      %v2345 = vmul.f32 1.0, %v2344
      %v2346 = vrcp.pop %v2333
      %v2347 = vmul.f32 1.0, %v2346
      %v2348 = vrcp.pop %v2334
      %v2349 = vmul.f32 1.0, %v2348
      %v2350 = vrcp.pop %v2335
      %v2351 = vmul.f32 1.0, %v2350
      %v2352 = vxor.u32 %v2246, 2147483648
      %v2353 = vxor.u32 %v2248, 2147483648
      %v2354 = vxor.u32 %v2250, 2147483648
      %v2355 = vxor.u32 %v2252, 2147483648
      %v2356 = vxor.u32 %v2256, 2147483648
      %v2357 = vxor.u32 %v2258, 2147483648
      %v2358 = vxor.u32 %v2260, 2147483648
      %v2359 = vxor.u32 %v2262, 2147483648
      %v2360 = vmul.f32 %v2352, 1.442695
      %v2361 = vpow.pop %v2360
      %v2362 = vmul.f32 %v2353, 1.442695
      %v2363 = vpow.pop %v2362
      %v2364 = vmul.f32 %v2354, 1.442695
      %v2365 = vpow.pop %v2364
      %v2366 = vmul.f32 %v2355, 1.442695
      %v2367 = vpow.pop %v2366
      %v2368 = vmul.f32 %v2356, 1.442695
      %v2369 = vpow.pop %v2368
      %v2370 = vmul.f32 %v2357, 1.442695
      %v2371 = vpow.pop %v2370
      %v2372 = vmul.f32 %v2358, 1.442695
      %v2373 = vpow.pop %v2372
      %v2374 = vmul.f32 %v2359, 1.442695
      %v2375 = vpow.pop %v2374
      %v2376 = vadd.f32 %v2361, 1.0
      %v2377 = vadd.f32 %v2363, 1.0
      %v2378 = vadd.f32 %v2365, 1.0
      %v2379 = vadd.f32 %v2367, 1.0
      %v2380 = vadd.f32 %v2369, 1.0
      %v2381 = vadd.f32 %v2371, 1.0
      %v2382 = vadd.f32 %v2373, 1.0
      %v2383 = vadd.f32 %v2375, 1.0
      %v2384 = vrcp.pop %v2376
      %v2385 = vmul.f32 1.0, %v2384
      %v2386 = vrcp.pop %v2377
      %v2387 = vmul.f32 1.0, %v2386
      %v2388 = vrcp.pop %v2378
      %v2389 = vmul.f32 1.0, %v2388
      %v2390 = vrcp.pop %v2379
      %v2391 = vmul.f32 1.0, %v2390
      %v2392 = vrcp.pop %v2380
      %v2393 = vmul.f32 1.0, %v2392
      %v2394 = vrcp.pop %v2381
      %v2395 = vmul.f32 1.0, %v2394
      %v2396 = vrcp.pop %v2382
      %v2397 = vmul.f32 1.0, %v2396
      %v2398 = vrcp.pop %v2383
      %v2399 = vmul.f32 1.0, %v2398
      %v2400 = vxor.u32 %v2266, 2147483648
      %v2401 = vxor.u32 %v2268, 2147483648
      %v2402 = vxor.u32 %v2270, 2147483648
      %v2403 = vxor.u32 %v2272, 2147483648
      %v2404 = vxor.u32 %v2276, 2147483648
      %v2405 = vxor.u32 %v2278, 2147483648
      %v2406 = vxor.u32 %v2280, 2147483648
      %v2407 = vxor.u32 %v2282, 2147483648
      %v2408 = vmul.f32 %v2400, 1.442695
      %v2409 = vpow.pop %v2408
      %v2410 = vmul.f32 %v2401, 1.442695
      %v2411 = vpow.pop %v2410
      %v2412 = vmul.f32 %v2402, 1.442695
      %v2413 = vpow.pop %v2412
      %v2414 = vmul.f32 %v2403, 1.442695
      %v2415 = vpow.pop %v2414
      %v2416 = vmul.f32 %v2404, 1.442695
      %v2417 = vpow.pop %v2416
      %v2418 = vmul.f32 %v2405, 1.442695
      %v2419 = vpow.pop %v2418
      %v2420 = vmul.f32 %v2406, 1.442695
      %v2421 = vpow.pop %v2420
      %v2422 = vmul.f32 %v2407, 1.442695
      %v2423 = vpow.pop %v2422
      %v2424 = vadd.f32 %v2409, 1.0
      %v2425 = vadd.f32 %v2411, 1.0
      %v2426 = vadd.f32 %v2413, 1.0
      %v2427 = vadd.f32 %v2415, 1.0
      %v2428 = vadd.f32 %v2417, 1.0
      %v2429 = vadd.f32 %v2419, 1.0
      %v2430 = vadd.f32 %v2421, 1.0
      %v2431 = vadd.f32 %v2423, 1.0
      %v2432 = vrcp.pop %v2424
      %v2433 = vmul.f32 1.0, %v2432
      %v2434 = vrcp.pop %v2425
      %v2435 = vmul.f32 1.0, %v2434
      %v2436 = vrcp.pop %v2426
      %v2437 = vmul.f32 1.0, %v2436
      %v2438 = vrcp.pop %v2427
      %v2439 = vmul.f32 1.0, %v2438
      %v2440 = vrcp.pop %v2428
      %v2441 = vmul.f32 1.0, %v2440
      %v2442 = vrcp.pop %v2429
      %v2443 = vmul.f32 1.0, %v2442
      %v2444 = vrcp.pop %v2430
      %v2445 = vmul.f32 1.0, %v2444
      %v2446 = vrcp.pop %v2431
      %v2447 = vmul.f32 1.0, %v2446
      %v2448 = vtanh.pop %v2286
      %v2449 = vtanh.pop %v2288
      %v2450 = vtanh.pop %v2290
      %v2451 = vtanh.pop %v2292
      %v2452 = vtanh.pop %v2296
      %v2453 = vtanh.pop %v2298
      %v2454 = vtanh.pop %v2300
      %v2455 = vtanh.pop %v2302
      %v2456 = vld [vmem:[%s376] sm:$0xff]
      %v2457 = vld [vmem:[%s376 + $0x8] sm:$0xff]
      %v2458 = vld [vmem:[%s376 + $0x10] sm:$0xff]
      %v2459 = vld [vmem:[%s376 + $0x18] sm:$0xff]
      %v2460 = vld [vmem:[%s376 + $0x20] sm:$0xff]
      %v2461 = vld [vmem:[%s376 + $0x28] sm:$0xff]
      %v2462 = vld [vmem:[%s376 + $0x30] sm:$0xff]
      %v2463 = vld [vmem:[%s376 + $0x38] sm:$0xff]
      %v2464 = vmul.f32 %v2385, %v2456
      %v2465 = vmul.f32 %v2387, %v2457
      %v2466 = vmul.f32 %v2389, %v2458
      %v2467 = vmul.f32 %v2391, %v2459
      %v2468 = vmul.f32 %v2393, %v2460
      %v2469 = vmul.f32 %v2395, %v2461
      %v2470 = vmul.f32 %v2397, %v2462
      %v2471 = vmul.f32 %v2399, %v2463
      %v2472 = vmul.f32 %v2337, %v2448
      %v2473 = vmul.f32 %v2339, %v2449
      %v2474 = vmul.f32 %v2341, %v2450
      %v2475 = vmul.f32 %v2343, %v2451
      %v2476 = vmul.f32 %v2345, %v2452
      %v2477 = vmul.f32 %v2347, %v2453
      %v2478 = vmul.f32 %v2349, %v2454
      %v2479 = vmul.f32 %v2351, %v2455
      %v2480 = vadd.f32 %v2464, %v2472
      %v2481 = vadd.f32 %v2465, %v2473
      %v2482 = vadd.f32 %v2466, %v2474
      %v2483 = vadd.f32 %v2467, %v2475
      %v2484 = vadd.f32 %v2468, %v2476
      %v2485 = vadd.f32 %v2469, %v2477
      %v2486 = vadd.f32 %v2470, %v2478
      %v2487 = vadd.f32 %v2471, %v2479
      %v2488 = vtanh.pop %v2480
      %v2489 = vtanh.pop %v2481
      %v2490 = vtanh.pop %v2482
      %v2491 = vtanh.pop %v2483
      %v2492 = vtanh.pop %v2484
      %v2493 = vtanh.pop %v2485
      %v2494 = vtanh.pop %v2486
      %v2495 = vtanh.pop %v2487
      %v2496 = vmul.f32 %v2433, %v2488
      %v2497 = vmul.f32 %v2435, %v2489
      %v2498 = vmul.f32 %v2437, %v2490
      %v2499 = vmul.f32 %v2439, %v2491
      %v2500 = vmul.f32 %v2441, %v2492
      %v2501 = vmul.f32 %v2443, %v2493
      %v2502 = vmul.f32 %v2445, %v2494
      %v2503 = vmul.f32 %v2447, %v2495
      %2504 = vst [vmem:[%s392] sm:$0xff] %v2496
      %2505 = vst [vmem:[%s392 + $0x8] sm:$0xff] %v2497
      %2506 = vst [vmem:[%s392 + $0x10] sm:$0xff] %v2498
      %2507 = vst [vmem:[%s392 + $0x18] sm:$0xff] %v2499
      %2508 = vst [vmem:[%s392 + $0x20] sm:$0xff] %v2500
      %2509 = vst [vmem:[%s392 + $0x28] sm:$0xff] %v2501
      %2510 = vst [vmem:[%s392 + $0x30] sm:$0xff] %v2502
      %2511 = vst [vmem:[%s392 + $0x38] sm:$0xff] %v2503
      %2512 = vst [vmem:[%s402] sm:$0xff] %v2480
      %2513 = vst [vmem:[%s402 + $0x8] sm:$0xff] %v2481
      %2514 = vst [vmem:[%s402 + $0x10] sm:$0xff] %v2482
      %2515 = vst [vmem:[%s402 + $0x18] sm:$0xff] %v2483
      %2516 = vst [vmem:[%s402 + $0x20] sm:$0xff] %v2484
      %2517 = vst [vmem:[%s402 + $0x28] sm:$0xff] %v2485
      %2518 = vst [vmem:[%s402 + $0x30] sm:$0xff] %v2486
      %2519 = vst [vmem:[%s402 + $0x38] sm:$0xff] %v2487
      %s2520 = smul.u32 2, %s24
      %p2521 = scmp.lt.s32.totalorder %s23, 1
      %s2522 = scalar_select %p2521, %s23, 1
      %p2523 = scmp.lt.s32.totalorder %s2520, 1
      %s2524 = scalar_select %p2523, %s2520, 1
      %s2525 = smul.addr %s2522, 8
      %s2526 = sadd.s32 %s2524, %s2525
      %s2527 = smul.addr %s2526, 8
      %s2528 = scalar_lea.vmem %s6, %s2527
      %s2529 = smul.u32 2, %s24
      %p2530 = scmp.lt.s32.totalorder %s23, 1
      %s2531 = scalar_select %p2530, %s23, 1
      %p2532 = scmp.lt.s32.totalorder %s2529, 1
      %s2533 = scalar_select %p2532, %s2529, 1
      %s2534 = smul.addr %s2531, 8
      %s2535 = sadd.s32 %s2533, %s2534
      %s2536 = smul.addr %s2535, 8
      %s2537 = scalar_lea.vmem %s7, %s2536
      // Predicated region
      $region49: #{convlstm_cell_forward.1} parent=43 // pred_check
        %p2538 = pneg %p199
      $region50: #{convlstm_cell_forward.1} parent=43 // pred_check_branch
        %2540 = sbr.rel (%p2538) target = $region52
      $region51: #{convlstm_cell_forward.1} parent=43 // pred_region
        %s2541 = smul.u32 2, %s24
      $region52: #{convlstm_cell_forward.1} parent=43 // pred_fallthru
        _
      // Predicated region
      $region53: #{convlstm_cell_forward.1} parent=43 // pred_check
        %p2542 = pneg %p227
      $region54: #{convlstm_cell_forward.1} parent=43 // pred_check_branch
        %2544 = sbr.rel (%p2542) target = $region56
      $region55: #{convlstm_cell_forward.1} parent=43 // pred_region
        %s2545 = smul.u32 2, %s24
      $region56: #{convlstm_cell_forward.1} parent=43 // pred_fallthru
        _
    $region44: #{convlstm_cell_forward.1} parent=5 // pred_fallthru
      _
    %p2546 = scmp.le.s32.totalorder 2, %s14
    // Predicated region
    $region57: #{convlstm_cell_forward.1} parent=5 // pred_check
      %p2547 = pneg %p2546
    $region58: #{convlstm_cell_forward.1} parent=5 // pred_check_branch
      %2549 = sbr.rel (%p2547) target = $region60
    $region59: #{convlstm_cell_forward.1} parent=5 // pred_region
      %s2550 = ssub.s32 %s14, 2
      // Predicated region
      $region61: #{convlstm_cell_forward.1} parent=59 // pred_check
        %p2551 = pneg %p205
      $region62: #{convlstm_cell_forward.1} parent=59 // pred_check_branch
        %2553 = sbr.rel (%p2551) target = $region64
      $region63: #{convlstm_cell_forward.1} parent=59 // pred_region
        %s2554 = smul.u32 2, %s26
        %p2555 = scmp.lt.s32.totalorder %s25, 1
        %s2556 = scalar_select %p2555, %s25, 1
        %p2557 = scmp.lt.s32.totalorder %s2554, 1
        %s2558 = scalar_select %p2557, %s2554, 1
        %s2559 = smul.addr %s2556, 8
        %s2560 = sadd.s32 %s2558, %s2559
        %s2561 = smul.addr %s2560, 8
        %s2562 = scalar_lea.vmem %s6, %s2561
      $region64: #{convlstm_cell_forward.1} parent=59 // pred_fallthru
        _
      // Predicated region
      $region65: #{convlstm_cell_forward.1} parent=59 // pred_check
        %p2563 = pneg %p233
      $region66: #{convlstm_cell_forward.1} parent=59 // pred_check_branch
        %2565 = sbr.rel (%p2563) target = $region68
      $region67: #{convlstm_cell_forward.1} parent=59 // pred_region
        %s2566 = smul.u32 2, %s26
        %p2567 = scmp.lt.s32.totalorder %s25, 1
        %s2568 = scalar_select %p2567, %s25, 1
        %p2569 = scmp.lt.s32.totalorder %s2566, 1
        %s2570 = scalar_select %p2569, %s2566, 1
        %s2571 = smul.addr %s2568, 8
        %s2572 = sadd.s32 %s2570, %s2571
        %s2573 = smul.addr %s2572, 8
        %s2574 = scalar_lea.vmem %s7, %s2573
      $region68: #{convlstm_cell_forward.1} parent=59 // pred_fallthru
        _
    $region60: #{convlstm_cell_forward.1} parent=5 // pred_fallthru
      _
  $region6: #{convlstm_cell_forward.1} parent=0 // loop_footer
    %s18 = sadd.s32 1, %s14
  $region7: #{convlstm_cell_forward.1} parent=0 // loop_footer_branch
    %13 = sbr.rel target = $region3
  $region8: #{convlstm_cell_forward.1} parent=0 // loop_exit
    _

</llo_original>
